<compile_context>
chip_gen: v5e
topology: v5e:2x2
jax: 0.10.0
libtpu: 0.0.40
codegen_flags: <defaults>
</compile_context>

<pallas_src>
import jax
import jax.numpy as jnp
from jax.experimental import pallas as pl
from jax.experimental.pallas import tpu as pltpu

GROWTH_RATE = 8
NUM_INIT_FEATURES = 2 * GROWTH_RATE          # 16
NUM_CLASSES = 2
SEQ_LEN = 100
CONV_K, CONV_PAD, CONV_STRIDE = 7, 3, 2
CONV_OUT_LEN = (SEQ_LEN + 2 * CONV_PAD - CONV_K) // CONV_STRIDE + 1       # 50
POOL_K, POOL_STRIDE, POOL_PAD = 3, 2, 1
POOL_OUT_LEN = (CONV_OUT_LEN + 2 * POOL_PAD - POOL_K) // POOL_STRIDE + 1  # 25
FLAT_FEATURES = NUM_INIT_FEATURES * POOL_OUT_LEN                          # 400
BN_EPS = 1e-5
LEAKY_THRESHOLD = 1.0   # snn.Leaky default; beta=0.9 irrelevant for a single step from zero state
BLOCK_B = 8             # batch elements per grid step


def _fused_forward_kernel(pe_ref, po_ref, wf_ref, bf_ref, wfc_ref, fcb_ref,
                          spk_ref, mem_ref):
    """Fused Conv1d+BN(folded) -> spike -> MaxPool1d -> Linear -> output Leaky."""
    wf = wf_ref[...]                       # (16, 7)   conv weight * bn scale
    bf = bf_ref[...]                       # (16, 1)   folded bn bias
    w0 = wfc_ref[0]                        # (16, 25)  fc weight, class 0, [c, j] order
    w1 = wfc_ref[1]                        # (16, 25)  fc weight, class 1
    b0 = fcb_ref[0]                        # scalar fc bias (SMEM)
    b1 = fcb_ref[1]
    block_b = pe_ref.shape[0]
    zero_col = jnp.zeros((NUM_INIT_FEATURES, 1), jnp.float32)

    def conv_bn(patches):                  # (7, 25) -> (16, 25), exact f32 on the VPU
        acc = wf[:, 0:1] * patches[0:1, :]
        for k in range(1, CONV_K):
            acc = acc + wf[:, k:k + 1] * patches[k:k + 1, :]
        return acc + bf

    mem_rows = []
    for b in range(block_b):               # static unroll over the batch block
        pe = pe_ref[b]                     # (7, 25) patches, even conv positions p=2j
        po = po_ref[b]                     # (7, 25) patches, odd  conv positions p=2j+1
        spk_e = (conv_bn(pe) > LEAKY_THRESHOLD).astype(jnp.float32)   # (16, 25)
        spk_o = (conv_bn(po) > LEAKY_THRESHOLD).astype(jnp.float32)   # (16, 25)
        # MaxPool1d(3, 2, 1): window j covers conv positions {2j-1, 2j, 2j+1};
        # position 2j-1 is the previous odd column (zero-fill at j=0, spikes are >= 0).
        prev_o = jnp.concatenate([zero_col, spk_o[:, :POOL_OUT_LEN - 1]], axis=1)
        pooled = jnp.maximum(jnp.maximum(spk_e, spk_o), prev_o)       # (16, 25)
        # Linear(400, 2): torch flatten order is c*25 + j, matching pooled[c, j].
        l0 = jnp.sum(pooled * w0, keepdims=True) + b0                 # (1, 1)
        l1 = jnp.sum(pooled * w1, keepdims=True) + b1                 # (1, 1)
        mem_rows.append(jnp.concatenate([l0, l1], axis=1))            # (1, 2)

    mem = jnp.concatenate(mem_rows, axis=0)                           # (block_b, 2)
    mem_ref[...] = mem
    # output snn.Leaky, single step from zero state: spk = (mem > threshold)
    spk_ref[...] = (mem > LEAKY_THRESHOLD).astype(jnp.float32)


def init_params(key):
    kconv, kg, kb, km, kv, kw, kbias = jax.random.split(key, 7)
    conv_w = jax.random.normal(kconv, (NUM_INIT_FEATURES, 1, CONV_K), jnp.float32) / jnp.sqrt(CONV_K)
    bn_gamma = jax.random.uniform(kg, (NUM_INIT_FEATURES,), jnp.float32, 0.5, 1.5)
    bn_beta = 0.1 * jax.random.normal(kb, (NUM_INIT_FEATURES,), jnp.float32)
    bn_mean = 0.1 * jax.random.normal(km, (NUM_INIT_FEATURES,), jnp.float32)
    bn_var = jax.random.uniform(kv, (NUM_INIT_FEATURES,), jnp.float32, 0.5, 1.5)
    fc_w = jax.random.normal(kw, (NUM_CLASSES, FLAT_FEATURES), jnp.float32) / jnp.sqrt(FLAT_FEATURES)
    fc_b = 0.1 * jax.random.normal(kbias, (NUM_CLASSES,), jnp.float32)
    return dict(conv_w=conv_w, bn_gamma=bn_gamma, bn_beta=bn_beta,
                bn_mean=bn_mean, bn_var=bn_var, fc_w=fc_w, fc_b=fc_b)


@jax.jit
def spiking_densenet_forward(x, params):
    """Pallas implementation of SpikingDenseNet.forward -> (spk, mem)."""
    x = x.astype(jnp.float32).reshape(-1, SEQ_LEN)           # x.view(-1, 1, 100), C=1 squeezed
    B = x.shape[0]
    Bp = ((B + BLOCK_B - 1) // BLOCK_B) * BLOCK_B            # pad batch to a block multiple

    # glue: zero-pad (batch + conv halo) and gather strided im2col patches split by
    # output-position parity so the in-kernel stride-2 maxpool needs no strided access.
    xpad = jnp.pad(x, ((0, Bp - B), (CONV_PAD, CONV_PAD)))   # (Bp, 106)
    k_off = jnp.arange(CONV_K)[:, None]                      # (7, 1)
    j_off = (2 * CONV_STRIDE) * jnp.arange(POOL_OUT_LEN)[None, :]   # (1, 25)
    pe = xpad[:, j_off + k_off]                              # (Bp, 7, 25)  conv pos p = 2j
    po = xpad[:, j_off + CONV_STRIDE + k_off]                # (Bp, 7, 25)  conv pos p = 2j+1

    # fold BatchNorm1d (inference / running stats) into the conv weight and bias
    scale = params['bn_gamma'] * jax.lax.rsqrt(params['bn_var'] + BN_EPS)      # (16,)
    wf = params['conv_w'].reshape(NUM_INIT_FEATURES, CONV_K) * scale[:, None]  # (16, 7)
    bf = (params['bn_beta'] - params['bn_mean'] * scale).reshape(NUM_INIT_FEATURES, 1)
    wfc = params['fc_w'].reshape(NUM_CLASSES, NUM_INIT_FEATURES, POOL_OUT_LEN)  # (2, 16, 25)
    fcb = params['fc_b']                                                        # (2,)

    grid = (Bp // BLOCK_B,)
    spk, mem = pl.pallas_call(
        _fused_forward_kernel,
        out_shape=(jax.ShapeDtypeStruct((Bp, NUM_CLASSES), jnp.float32),
                   jax.ShapeDtypeStruct((Bp, NUM_CLASSES), jnp.float32)),
        grid=grid,
        in_specs=[
            pl.BlockSpec((BLOCK_B, CONV_K, POOL_OUT_LEN), lambda i: (i, 0, 0)),
            pl.BlockSpec((BLOCK_B, CONV_K, POOL_OUT_LEN), lambda i: (i, 0, 0)),
            pl.BlockSpec((NUM_INIT_FEATURES, CONV_K), lambda i: (0, 0)),
            pl.BlockSpec((NUM_INIT_FEATURES, 1), lambda i: (0, 0)),
            pl.BlockSpec((NUM_CLASSES, NUM_INIT_FEATURES, POOL_OUT_LEN),
                         lambda i: (0, 0, 0)),
            pl.BlockSpec(memory_space=pltpu.MemorySpace.SMEM),   # fc bias as SMEM scalars
        ],
        out_specs=(pl.BlockSpec((BLOCK_B, NUM_CLASSES), lambda i: (i, 0)),
                   pl.BlockSpec((BLOCK_B, NUM_CLASSES), lambda i: (i, 0))),
        compiler_params=pltpu.CompilerParams(dimension_semantics=("parallel",)),
    )(pe, po, wf, bf, wfc, fcb)
    return spk[:B], mem[:B]


def reference_forward(x, params):
    """Pure-JAX reference mirroring the PyTorch forward (inference-mode BN)."""
    x = x.astype(jnp.float32).reshape(-1, 1, SEQ_LEN)
    feat = jax.lax.conv_general_dilated(
        x, params['conv_w'], window_strides=(CONV_STRIDE,),
        padding=((CONV_PAD, CONV_PAD),),
        dimension_numbers=('NCH', 'OIH', 'NCH'),
        precision=jax.lax.Precision.HIGHEST)
    g = params['bn_gamma'][None, :, None]
    b = params['bn_beta'][None, :, None]
    m = params['bn_mean'][None, :, None]
    v = params['bn_var'][None, :, None]
    feat = (feat - m) / jnp.sqrt(v + BN_EPS) * g + b
    spk = (feat > LEAKY_THRESHOLD).astype(jnp.float32)
    pooled = jax.lax.reduce_window(
        spk, -jnp.inf, jax.lax.max,
        window_dimensions=(1, 1, POOL_K), window_strides=(1, 1, POOL_STRIDE),
        padding=((0, 0), (0, 0), (POOL_PAD, POOL_PAD)))
    flat = pooled.reshape(x.shape[0], -1)
    logits = jnp.dot(flat, params['fc_w'].T,
                     precision=jax.lax.Precision.HIGHEST) + params['fc_b']
    return (logits > LEAKY_THRESHOLD).astype(jnp.float32), logits


if __name__ == "__main__":
    key = jax.random.PRNGKey(0)
    kx, kp = jax.random.split(key)
    x = jax.random.normal(kx, (2, 1, SEQ_LEN), jnp.float32)      # (batch=2, 1, 100), NCL
    params = init_params(kp)

    spk, mem = spiking_densenet_forward(x, params)
    (spk, mem) = jax.block_until_ready((spk, mem))

    ref_spk, ref_mem = reference_forward(x, params)
    assert spk.shape == (2, NUM_CLASSES) and mem.shape == (2, NUM_CLASSES)
    assert jnp.allclose(mem, ref_mem, atol=1e-3, rtol=1e-3)
    assert jnp.allclose(spk, ref_spk)
    print("KERNEL_OK")
</pallas_src>

<mosaic_0001>
module attributes {stable_mosaic.version = 11 : i64} {
  func.func @_fused_forward_kernel(%arg0: i32, %arg1: memref<8x7x25xf32, #tpu.memory_space<vmem>>, %arg2: memref<8x7x25xf32, #tpu.memory_space<vmem>>, %arg3: memref<16x7xf32, #tpu.memory_space<vmem>>, %arg4: memref<16x1xf32, #tpu.memory_space<vmem>>, %arg5: memref<2x16x25xf32, #tpu.memory_space<vmem>>, %arg6: memref<2xf32, #tpu.memory_space<smem>>, %arg7: memref<8x2xf32, #tpu.memory_space<vmem>>, %arg8: memref<8x2xf32, #tpu.memory_space<vmem>>) attributes {dimension_semantics = [#tpu.dimension_semantics<parallel>], iteration_bounds = array<i64: 1>, scalar_prefetch = 0 : i64, scratch_operands = 0 : i64, tpu.core_type = #tpu.core_type<tc>, window_params = [{transform_indices = @transform_0, window_bounds = array<i64: 8, 7, 25>}, {transform_indices = @transform_1, window_bounds = array<i64: 8, 7, 25>}, {pipeline_mode = #tpu.pipeline_mode<synchronous>, transform_indices = @transform_2, window_bounds = array<i64: 16, 7>}, {pipeline_mode = #tpu.pipeline_mode<synchronous>, transform_indices = @transform_3, window_bounds = array<i64: 16, 1>}, {pipeline_mode = #tpu.pipeline_mode<synchronous>, transform_indices = @transform_4, window_bounds = array<i64: 2, 16, 25>}, {transform_indices = @transform_5, window_bounds = array<i64: 2>}, {transform_indices = @transform_6, window_bounds = array<i64: 8, 2>}, {transform_indices = @transform_7, window_bounds = array<i64: 8, 2>}]} {
    %c0 = arith.constant 0 : index
    %c0_0 = arith.constant 0 : index
    %0 = vector.load %arg3[%c0, %c0_0] : memref<16x7xf32, #tpu.memory_space<vmem>>, vector<16x7xf32>
    %c0_1 = arith.constant 0 : index
    %c0_2 = arith.constant 0 : index
    %1 = vector.load %arg4[%c0_1, %c0_2] : memref<16x1xf32, #tpu.memory_space<vmem>>, vector<16x1xf32>
    %c0_3 = arith.constant 0 : index
    %c0_4 = arith.constant 0 : index
    %c0_5 = arith.constant 0 : index
    %2 = vector.load %arg5[%c0_3, %c0_4, %c0_5] : memref<2x16x25xf32, #tpu.memory_space<vmem>>, vector<1x16x25xf32>
    %3 = vector.shape_cast %2 : vector<1x16x25xf32> to vector<16x25xf32>
    %c1 = arith.constant 1 : index
    %c0_6 = arith.constant 0 : index
    %c0_7 = arith.constant 0 : index
    %4 = vector.load %arg5[%c1, %c0_6, %c0_7] : memref<2x16x25xf32, #tpu.memory_space<vmem>>, vector<1x16x25xf32>
    %5 = vector.shape_cast %4 : vector<1x16x25xf32> to vector<16x25xf32>
    %c0_8 = arith.constant 0 : index
    %6 = memref.load %arg6[%c0_8] : memref<2xf32, #tpu.memory_space<smem>>
    %c1_9 = arith.constant 1 : index
    %7 = memref.load %arg6[%c1_9] : memref<2xf32, #tpu.memory_space<smem>>
    %cst = arith.constant 0.000000e+00 : f32
    %8 = vector.broadcast %cst : f32 to vector<16x1xf32>
    %c0_10 = arith.constant 0 : index
    %c0_11 = arith.constant 0 : index
    %c0_12 = arith.constant 0 : index
    %9 = vector.load %arg1[%c0_10, %c0_11, %c0_12] : memref<8x7x25xf32, #tpu.memory_space<vmem>>, vector<1x7x25xf32>
    %10 = vector.shape_cast %9 : vector<1x7x25xf32> to vector<7x25xf32>
    %c0_13 = arith.constant 0 : index
    %c0_14 = arith.constant 0 : index
    %c0_15 = arith.constant 0 : index
    %11 = vector.load %arg2[%c0_13, %c0_14, %c0_15] : memref<8x7x25xf32, #tpu.memory_space<vmem>>, vector<1x7x25xf32>
    %12 = vector.shape_cast %11 : vector<1x7x25xf32> to vector<7x25xf32>
    %13 = vector.extract_strided_slice %0 {offsets = [0, 0], sizes = [16, 1], strides = [1, 1]} : vector<16x7xf32> to vector<16x1xf32>
    %14 = vector.extract_strided_slice %10 {offsets = [0, 0], sizes = [1, 25], strides = [1, 1]} : vector<7x25xf32> to vector<1x25xf32>
    %15 = vector.broadcast %13 : vector<16x1xf32> to vector<16x25xf32>
    %16 = vector.broadcast %14 : vector<1x25xf32> to vector<16x25xf32>
    %17 = arith.mulf %15, %16 : vector<16x25xf32>
    %18 = vector.extract_strided_slice %0 {offsets = [0, 1], sizes = [16, 1], strides = [1, 1]} : vector<16x7xf32> to vector<16x1xf32>
    %19 = vector.extract_strided_slice %10 {offsets = [1, 0], sizes = [1, 25], strides = [1, 1]} : vector<7x25xf32> to vector<1x25xf32>
    %20 = vector.broadcast %18 : vector<16x1xf32> to vector<16x25xf32>
    %21 = vector.broadcast %19 : vector<1x25xf32> to vector<16x25xf32>
    %22 = arith.mulf %20, %21 : vector<16x25xf32>
    %23 = arith.addf %17, %22 : vector<16x25xf32>
    %24 = vector.extract_strided_slice %0 {offsets = [0, 2], sizes = [16, 1], strides = [1, 1]} : vector<16x7xf32> to vector<16x1xf32>
    %25 = vector.extract_strided_slice %10 {offsets = [2, 0], sizes = [1, 25], strides = [1, 1]} : vector<7x25xf32> to vector<1x25xf32>
    %26 = vector.broadcast %24 : vector<16x1xf32> to vector<16x25xf32>
    %27 = vector.broadcast %25 : vector<1x25xf32> to vector<16x25xf32>
    %28 = arith.mulf %26, %27 : vector<16x25xf32>
    %29 = arith.addf %23, %28 : vector<16x25xf32>
    %30 = vector.extract_strided_slice %0 {offsets = [0, 3], sizes = [16, 1], strides = [1, 1]} : vector<16x7xf32> to vector<16x1xf32>
    %31 = vector.extract_strided_slice %10 {offsets = [3, 0], sizes = [1, 25], strides = [1, 1]} : vector<7x25xf32> to vector<1x25xf32>
    %32 = vector.broadcast %30 : vector<16x1xf32> to vector<16x25xf32>
    %33 = vector.broadcast %31 : vector<1x25xf32> to vector<16x25xf32>
    %34 = arith.mulf %32, %33 : vector<16x25xf32>
    %35 = arith.addf %29, %34 : vector<16x25xf32>
    %36 = vector.extract_strided_slice %0 {offsets = [0, 4], sizes = [16, 1], strides = [1, 1]} : vector<16x7xf32> to vector<16x1xf32>
    %37 = vector.extract_strided_slice %10 {offsets = [4, 0], sizes = [1, 25], strides = [1, 1]} : vector<7x25xf32> to vector<1x25xf32>
    %38 = vector.broadcast %36 : vector<16x1xf32> to vector<16x25xf32>
    %39 = vector.broadcast %37 : vector<1x25xf32> to vector<16x25xf32>
    %40 = arith.mulf %38, %39 : vector<16x25xf32>
    %41 = arith.addf %35, %40 : vector<16x25xf32>
    %42 = vector.extract_strided_slice %0 {offsets = [0, 5], sizes = [16, 1], strides = [1, 1]} : vector<16x7xf32> to vector<16x1xf32>
    %43 = vector.extract_strided_slice %10 {offsets = [5, 0], sizes = [1, 25], strides = [1, 1]} : vector<7x25xf32> to vector<1x25xf32>
    %44 = vector.broadcast %42 : vector<16x1xf32> to vector<16x25xf32>
    %45 = vector.broadcast %43 : vector<1x25xf32> to vector<16x25xf32>
    %46 = arith.mulf %44, %45 : vector<16x25xf32>
    %47 = arith.addf %41, %46 : vector<16x25xf32>
    %48 = vector.extract_strided_slice %0 {offsets = [0, 6], sizes = [16, 1], strides = [1, 1]} : vector<16x7xf32> to vector<16x1xf32>
    %49 = vector.extract_strided_slice %10 {offsets = [6, 0], sizes = [1, 25], strides = [1, 1]} : vector<7x25xf32> to vector<1x25xf32>
    %50 = vector.broadcast %48 : vector<16x1xf32> to vector<16x25xf32>
    %51 = vector.broadcast %49 : vector<1x25xf32> to vector<16x25xf32>
    %52 = arith.mulf %50, %51 : vector<16x25xf32>
    %53 = arith.addf %47, %52 : vector<16x25xf32>
    %54 = vector.broadcast %1 : vector<16x1xf32> to vector<16x25xf32>
    %55 = arith.addf %53, %54 : vector<16x25xf32>
    %cst_16 = arith.constant 1.000000e+00 : f32
    %56 = vector.broadcast %cst_16 : f32 to vector<16x25xf32>
    %57 = arith.cmpf ogt, %55, %56 : vector<16x25xf32>
    %58 = arith.extui %57 : vector<16x25xi1> to vector<16x25xi32>
    %59 = arith.sitofp %58 : vector<16x25xi32> to vector<16x25xf32>
    %60 = vector.extract_strided_slice %0 {offsets = [0, 0], sizes = [16, 1], strides = [1, 1]} : vector<16x7xf32> to vector<16x1xf32>
    %61 = vector.extract_strided_slice %12 {offsets = [0, 0], sizes = [1, 25], strides = [1, 1]} : vector<7x25xf32> to vector<1x25xf32>
    %62 = vector.broadcast %60 : vector<16x1xf32> to vector<16x25xf32>
    %63 = vector.broadcast %61 : vector<1x25xf32> to vector<16x25xf32>
    %64 = arith.mulf %62, %63 : vector<16x25xf32>
    %65 = vector.extract_strided_slice %0 {offsets = [0, 1], sizes = [16, 1], strides = [1, 1]} : vector<16x7xf32> to vector<16x1xf32>
    %66 = vector.extract_strided_slice %12 {offsets = [1, 0], sizes = [1, 25], strides = [1, 1]} : vector<7x25xf32> to vector<1x25xf32>
    %67 = vector.broadcast %65 : vector<16x1xf32> to vector<16x25xf32>
    %68 = vector.broadcast %66 : vector<1x25xf32> to vector<16x25xf32>
    %69 = arith.mulf %67, %68 : vector<16x25xf32>
    %70 = arith.addf %64, %69 : vector<16x25xf32>
    %71 = vector.extract_strided_slice %0 {offsets = [0, 2], sizes = [16, 1], strides = [1, 1]} : vector<16x7xf32> to vector<16x1xf32>
    %72 = vector.extract_strided_slice %12 {offsets = [2, 0], sizes = [1, 25], strides = [1, 1]} : vector<7x25xf32> to vector<1x25xf32>
    %73 = vector.broadcast %71 : vector<16x1xf32> to vector<16x25xf32>
    %74 = vector.broadcast %72 : vector<1x25xf32> to vector<16x25xf32>
    %75 = arith.mulf %73, %74 : vector<16x25xf32>
    %76 = arith.addf %70, %75 : vector<16x25xf32>
    %77 = vector.extract_strided_slice %0 {offsets = [0, 3], sizes = [16, 1], strides = [1, 1]} : vector<16x7xf32> to vector<16x1xf32>
    %78 = vector.extract_strided_slice %12 {offsets = [3, 0], sizes = [1, 25], strides = [1, 1]} : vector<7x25xf32> to vector<1x25xf32>
    %79 = vector.broadcast %77 : vector<16x1xf32> to vector<16x25xf32>
    %80 = vector.broadcast %78 : vector<1x25xf32> to vector<16x25xf32>
    %81 = arith.mulf %79, %80 : vector<16x25xf32>
    %82 = arith.addf %76, %81 : vector<16x25xf32>
    %83 = vector.extract_strided_slice %0 {offsets = [0, 4], sizes = [16, 1], strides = [1, 1]} : vector<16x7xf32> to vector<16x1xf32>
    %84 = vector.extract_strided_slice %12 {offsets = [4, 0], sizes = [1, 25], strides = [1, 1]} : vector<7x25xf32> to vector<1x25xf32>
    %85 = vector.broadcast %83 : vector<16x1xf32> to vector<16x25xf32>
    %86 = vector.broadcast %84 : vector<1x25xf32> to vector<16x25xf32>
    %87 = arith.mulf %85, %86 : vector<16x25xf32>
    %88 = arith.addf %82, %87 : vector<16x25xf32>
    %89 = vector.extract_strided_slice %0 {offsets = [0, 5], sizes = [16, 1], strides = [1, 1]} : vector<16x7xf32> to vector<16x1xf32>
    %90 = vector.extract_strided_slice %12 {offsets = [5, 0], sizes = [1, 25], strides = [1, 1]} : vector<7x25xf32> to vector<1x25xf32>
    %91 = vector.broadcast %89 : vector<16x1xf32> to vector<16x25xf32>
    %92 = vector.broadcast %90 : vector<1x25xf32> to vector<16x25xf32>
    %93 = arith.mulf %91, %92 : vector<16x25xf32>
    %94 = arith.addf %88, %93 : vector<16x25xf32>
    %95 = vector.extract_strided_slice %0 {offsets = [0, 6], sizes = [16, 1], strides = [1, 1]} : vector<16x7xf32> to vector<16x1xf32>
    %96 = vector.extract_strided_slice %12 {offsets = [6, 0], sizes = [1, 25], strides = [1, 1]} : vector<7x25xf32> to vector<1x25xf32>
    %97 = vector.broadcast %95 : vector<16x1xf32> to vector<16x25xf32>
    %98 = vector.broadcast %96 : vector<1x25xf32> to vector<16x25xf32>
    %99 = arith.mulf %97, %98 : vector<16x25xf32>
    %100 = arith.addf %94, %99 : vector<16x25xf32>
    %101 = vector.broadcast %1 : vector<16x1xf32> to vector<16x25xf32>
    %102 = arith.addf %100, %101 : vector<16x25xf32>
    %cst_17 = arith.constant 1.000000e+00 : f32
    %103 = vector.broadcast %cst_17 : f32 to vector<16x25xf32>
    %104 = arith.cmpf ogt, %102, %103 : vector<16x25xf32>
    %105 = arith.extui %104 : vector<16x25xi1> to vector<16x25xi32>
    %106 = arith.sitofp %105 : vector<16x25xi32> to vector<16x25xf32>
    %107 = vector.extract_strided_slice %106 {offsets = [0, 0], sizes = [16, 24], strides = [1, 1]} : vector<16x25xf32> to vector<16x24xf32>
    %108 = tpu.concatenate %8, %107 in 1 : vector<16x1xf32>, vector<16x24xf32> -> vector<16x25xf32>
    %109 = arith.maximumf %59, %106 : vector<16x25xf32>
    %110 = arith.maximumf %109, %108 : vector<16x25xf32>
    %111 = arith.mulf %110, %3 : vector<16x25xf32>
    %112 = vector.shape_cast %111 : vector<16x25xf32> to vector<1x16x25xf32>
    %cst_18 = arith.constant dense<0.000000e+00> : vector<1xf32>
    %113 = vector.multi_reduction <add>, %112, %cst_18 [1, 2] : vector<1x16x25xf32> to vector<1xf32>
    %114 = vector.shape_cast %113 : vector<1xf32> to vector<1x1x1xf32>
    %115 = vector.extract %114[0, 0, 0] : f32 from vector<1x1x1xf32>
    %116 = vector.broadcast %115 : f32 to vector<1x1xf32>
    %117 = vector.broadcast %6 : f32 to vector<1x1xf32>
    %118 = arith.addf %116, %117 : vector<1x1xf32>
    %119 = arith.mulf %110, %5 : vector<16x25xf32>
    %120 = vector.shape_cast %119 : vector<16x25xf32> to vector<1x16x25xf32>
    %cst_19 = arith.constant dense<0.000000e+00> : vector<1xf32>
    %121 = vector.multi_reduction <add>, %120, %cst_19 [1, 2] : vector<1x16x25xf32> to vector<1xf32>
    %122 = vector.shape_cast %121 : vector<1xf32> to vector<1x1x1xf32>
    %123 = vector.extract %122[0, 0, 0] : f32 from vector<1x1x1xf32>
    %124 = vector.broadcast %123 : f32 to vector<1x1xf32>
    %125 = vector.broadcast %7 : f32 to vector<1x1xf32>
    %126 = arith.addf %124, %125 : vector<1x1xf32>
    %127 = tpu.concatenate %118, %126 in 1 : vector<1x1xf32>, vector<1x1xf32> -> vector<1x2xf32>
    %c1_20 = arith.constant 1 : index
    %c0_21 = arith.constant 0 : index
    %c0_22 = arith.constant 0 : index
    %128 = vector.load %arg1[%c1_20, %c0_21, %c0_22] : memref<8x7x25xf32, #tpu.memory_space<vmem>>, vector<1x7x25xf32>
    %129 = vector.shape_cast %128 : vector<1x7x25xf32> to vector<7x25xf32>
    %c1_23 = arith.constant 1 : index
    %c0_24 = arith.constant 0 : index
    %c0_25 = arith.constant 0 : index
    %130 = vector.load %arg2[%c1_23, %c0_24, %c0_25] : memref<8x7x25xf32, #tpu.memory_space<vmem>>, vector<1x7x25xf32>
    %131 = vector.shape_cast %130 : vector<1x7x25xf32> to vector<7x25xf32>
    %132 = vector.extract_strided_slice %0 {offsets = [0, 0], sizes = [16, 1], strides = [1, 1]} : vector<16x7xf32> to vector<16x1xf32>
    %133 = vector.extract_strided_slice %129 {offsets = [0, 0], sizes = [1, 25], strides = [1, 1]} : vector<7x25xf32> to vector<1x25xf32>
    %134 = vector.broadcast %132 : vector<16x1xf32> to vector<16x25xf32>
    %135 = vector.broadcast %133 : vector<1x25xf32> to vector<16x25xf32>
    %136 = arith.mulf %134, %135 : vector<16x25xf32>
    %137 = vector.extract_strided_slice %0 {offsets = [0, 1], sizes = [16, 1], strides = [1, 1]} : vector<16x7xf32> to vector<16x1xf32>
    %138 = vector.extract_strided_slice %129 {offsets = [1, 0], sizes = [1, 25], strides = [1, 1]} : vector<7x25xf32> to vector<1x25xf32>
    %139 = vector.broadcast %137 : vector<16x1xf32> to vector<16x25xf32>
    %140 = vector.broadcast %138 : vector<1x25xf32> to vector<16x25xf32>
    %141 = arith.mulf %139, %140 : vector<16x25xf32>
    %142 = arith.addf %136, %141 : vector<16x25xf32>
    %143 = vector.extract_strided_slice %0 {offsets = [0, 2], sizes = [16, 1], strides = [1, 1]} : vector<16x7xf32> to vector<16x1xf32>
    %144 = vector.extract_strided_slice %129 {offsets = [2, 0], sizes = [1, 25], strides = [1, 1]} : vector<7x25xf32> to vector<1x25xf32>
    %145 = vector.broadcast %143 : vector<16x1xf32> to vector<16x25xf32>
    %146 = vector.broadcast %144 : vector<1x25xf32> to vector<16x25xf32>
    %147 = arith.mulf %145, %146 : vector<16x25xf32>
    %148 = arith.addf %142, %147 : vector<16x25xf32>
    %149 = vector.extract_strided_slice %0 {offsets = [0, 3], sizes = [16, 1], strides = [1, 1]} : vector<16x7xf32> to vector<16x1xf32>
    %150 = vector.extract_strided_slice %129 {offsets = [3, 0], sizes = [1, 25], strides = [1, 1]} : vector<7x25xf32> to vector<1x25xf32>
    %151 = vector.broadcast %149 : vector<16x1xf32> to vector<16x25xf32>
    %152 = vector.broadcast %150 : vector<1x25xf32> to vector<16x25xf32>
    %153 = arith.mulf %151, %152 : vector<16x25xf32>
    %154 = arith.addf %148, %153 : vector<16x25xf32>
    %155 = vector.extract_strided_slice %0 {offsets = [0, 4], sizes = [16, 1], strides = [1, 1]} : vector<16x7xf32> to vector<16x1xf32>
    %156 = vector.extract_strided_slice %129 {offsets = [4, 0], sizes = [1, 25], strides = [1, 1]} : vector<7x25xf32> to vector<1x25xf32>
    %157 = vector.broadcast %155 : vector<16x1xf32> to vector<16x25xf32>
    %158 = vector.broadcast %156 : vector<1x25xf32> to vector<16x25xf32>
    %159 = arith.mulf %157, %158 : vector<16x25xf32>
    %160 = arith.addf %154, %159 : vector<16x25xf32>
    %161 = vector.extract_strided_slice %0 {offsets = [0, 5], sizes = [16, 1], strides = [1, 1]} : vector<16x7xf32> to vector<16x1xf32>
    %162 = vector.extract_strided_slice %129 {offsets = [5, 0], sizes = [1, 25], strides = [1, 1]} : vector<7x25xf32> to vector<1x25xf32>
    %163 = vector.broadcast %161 : vector<16x1xf32> to vector<16x25xf32>
    %164 = vector.broadcast %162 : vector<1x25xf32> to vector<16x25xf32>
    %165 = arith.mulf %163, %164 : vector<16x25xf32>
    %166 = arith.addf %160, %165 : vector<16x25xf32>
    %167 = vector.extract_strided_slice %0 {offsets = [0, 6], sizes = [16, 1], strides = [1, 1]} : vector<16x7xf32> to vector<16x1xf32>
    %168 = vector.extract_strided_slice %129 {offsets = [6, 0], sizes = [1, 25], strides = [1, 1]} : vector<7x25xf32> to vector<1x25xf32>
    %169 = vector.broadcast %167 : vector<16x1xf32> to vector<16x25xf32>
    %170 = vector.broadcast %168 : vector<1x25xf32> to vector<16x25xf32>
    %171 = arith.mulf %169, %170 : vector<16x25xf32>
    %172 = arith.addf %166, %171 : vector<16x25xf32>
    %173 = vector.broadcast %1 : vector<16x1xf32> to vector<16x25xf32>
    %174 = arith.addf %172, %173 : vector<16x25xf32>
    %cst_26 = arith.constant 1.000000e+00 : f32
    %175 = vector.broadcast %cst_26 : f32 to vector<16x25xf32>
    %176 = arith.cmpf ogt, %174, %175 : vector<16x25xf32>
    %177 = arith.extui %176 : vector<16x25xi1> to vector<16x25xi32>
    %178 = arith.sitofp %177 : vector<16x25xi32> to vector<16x25xf32>
    %179 = vector.extract_strided_slice %0 {offsets = [0, 0], sizes = [16, 1], strides = [1, 1]} : vector<16x7xf32> to vector<16x1xf32>
    %180 = vector.extract_strided_slice %131 {offsets = [0, 0], sizes = [1, 25], strides = [1, 1]} : vector<7x25xf32> to vector<1x25xf32>
    %181 = vector.broadcast %179 : vector<16x1xf32> to vector<16x25xf32>
    %182 = vector.broadcast %180 : vector<1x25xf32> to vector<16x25xf32>
    %183 = arith.mulf %181, %182 : vector<16x25xf32>
    %184 = vector.extract_strided_slice %0 {offsets = [0, 1], sizes = [16, 1], strides = [1, 1]} : vector<16x7xf32> to vector<16x1xf32>
    %185 = vector.extract_strided_slice %131 {offsets = [1, 0], sizes = [1, 25], strides = [1, 1]} : vector<7x25xf32> to vector<1x25xf32>
    %186 = vector.broadcast %184 : vector<16x1xf32> to vector<16x25xf32>
    %187 = vector.broadcast %185 : vector<1x25xf32> to vector<16x25xf32>
    %188 = arith.mulf %186, %187 : vector<16x25xf32>
    %189 = arith.addf %183, %188 : vector<16x25xf32>
    %190 = vector.extract_strided_slice %0 {offsets = [0, 2], sizes = [16, 1], strides = [1, 1]} : vector<16x7xf32> to vector<16x1xf32>
    %191 = vector.extract_strided_slice %131 {offsets = [2, 0], sizes = [1, 25], strides = [1, 1]} : vector<7x25xf32> to vector<1x25xf32>
    %192 = vector.broadcast %190 : vector<16x1xf32> to vector<16x25xf32>
    %193 = vector.broadcast %191 : vector<1x25xf32> to vector<16x25xf32>
    %194 = arith.mulf %192, %193 : vector<16x25xf32>
    %195 = arith.addf %189, %194 : vector<16x25xf32>
    %196 = vector.extract_strided_slice %0 {offsets = [0, 3], sizes = [16, 1], strides = [1, 1]} : vector<16x7xf32> to vector<16x1xf32>
    %197 = vector.extract_strided_slice %131 {offsets = [3, 0], sizes = [1, 25], strides = [1, 1]} : vector<7x25xf32> to vector<1x25xf32>
    %198 = vector.broadcast %196 : vector<16x1xf32> to vector<16x25xf32>
    %199 = vector.broadcast %197 : vector<1x25xf32> to vector<16x25xf32>
    %200 = arith.mulf %198, %199 : vector<16x25xf32>
    %201 = arith.addf %195, %200 : vector<16x25xf32>
    %202 = vector.extract_strided_slice %0 {offsets = [0, 4], sizes = [16, 1], strides = [1, 1]} : vector<16x7xf32> to vector<16x1xf32>
    %203 = vector.extract_strided_slice %131 {offsets = [4, 0], sizes = [1, 25], strides = [1, 1]} : vector<7x25xf32> to vector<1x25xf32>
    %204 = vector.broadcast %202 : vector<16x1xf32> to vector<16x25xf32>
    %205 = vector.broadcast %203 : vector<1x25xf32> to vector<16x25xf32>
    %206 = arith.mulf %204, %205 : vector<16x25xf32>
    %207 = arith.addf %201, %206 : vector<16x25xf32>
    %208 = vector.extract_strided_slice %0 {offsets = [0, 5], sizes = [16, 1], strides = [1, 1]} : vector<16x7xf32> to vector<16x1xf32>
    %209 = vector.extract_strided_slice %131 {offsets = [5, 0], sizes = [1, 25], strides = [1, 1]} : vector<7x25xf32> to vector<1x25xf32>
    %210 = vector.broadcast %208 : vector<16x1xf32> to vector<16x25xf32>
    %211 = vector.broadcast %209 : vector<1x25xf32> to vector<16x25xf32>
    %212 = arith.mulf %210, %211 : vector<16x25xf32>
    %213 = arith.addf %207, %212 : vector<16x25xf32>
    %214 = vector.extract_strided_slice %0 {offsets = [0, 6], sizes = [16, 1], strides = [1, 1]} : vector<16x7xf32> to vector<16x1xf32>
    %215 = vector.extract_strided_slice %131 {offsets = [6, 0], sizes = [1, 25], strides = [1, 1]} : vector<7x25xf32> to vector<1x25xf32>
    %216 = vector.broadcast %214 : vector<16x1xf32> to vector<16x25xf32>
    %217 = vector.broadcast %215 : vector<1x25xf32> to vector<16x25xf32>
    %218 = arith.mulf %216, %217 : vector<16x25xf32>
    %219 = arith.addf %213, %218 : vector<16x25xf32>
    %220 = vector.broadcast %1 : vector<16x1xf32> to vector<16x25xf32>
    %221 = arith.addf %219, %220 : vector<16x25xf32>
    %cst_27 = arith.constant 1.000000e+00 : f32
    %222 = vector.broadcast %cst_27 : f32 to vector<16x25xf32>
    %223 = arith.cmpf ogt, %221, %222 : vector<16x25xf32>
    %224 = arith.extui %223 : vector<16x25xi1> to vector<16x25xi32>
    %225 = arith.sitofp %224 : vector<16x25xi32> to vector<16x25xf32>
    %226 = vector.extract_strided_slice %225 {offsets = [0, 0], sizes = [16, 24], strides = [1, 1]} : vector<16x25xf32> to vector<16x24xf32>
    %227 = tpu.concatenate %8, %226 in 1 : vector<16x1xf32>, vector<16x24xf32> -> vector<16x25xf32>
    %228 = arith.maximumf %178, %225 : vector<16x25xf32>
    %229 = arith.maximumf %228, %227 : vector<16x25xf32>
    %230 = arith.mulf %229, %3 : vector<16x25xf32>
    %231 = vector.shape_cast %230 : vector<16x25xf32> to vector<1x16x25xf32>
    %cst_28 = arith.constant dense<0.000000e+00> : vector<1xf32>
    %232 = vector.multi_reduction <add>, %231, %cst_28 [1, 2] : vector<1x16x25xf32> to vector<1xf32>
    %233 = vector.shape_cast %232 : vector<1xf32> to vector<1x1x1xf32>
    %234 = vector.extract %233[0, 0, 0] : f32 from vector<1x1x1xf32>
    %235 = vector.broadcast %234 : f32 to vector<1x1xf32>
    %236 = vector.broadcast %6 : f32 to vector<1x1xf32>
    %237 = arith.addf %235, %236 : vector<1x1xf32>
    %238 = arith.mulf %229, %5 : vector<16x25xf32>
    %239 = vector.shape_cast %238 : vector<16x25xf32> to vector<1x16x25xf32>
    %cst_29 = arith.constant dense<0.000000e+00> : vector<1xf32>
    %240 = vector.multi_reduction <add>, %239, %cst_29 [1, 2] : vector<1x16x25xf32> to vector<1xf32>
    %241 = vector.shape_cast %240 : vector<1xf32> to vector<1x1x1xf32>
    %242 = vector.extract %241[0, 0, 0] : f32 from vector<1x1x1xf32>
    %243 = vector.broadcast %242 : f32 to vector<1x1xf32>
    %244 = vector.broadcast %7 : f32 to vector<1x1xf32>
    %245 = arith.addf %243, %244 : vector<1x1xf32>
    %246 = tpu.concatenate %237, %245 in 1 : vector<1x1xf32>, vector<1x1xf32> -> vector<1x2xf32>
    %c2 = arith.constant 2 : index
    %c0_30 = arith.constant 0 : index
    %c0_31 = arith.constant 0 : index
    %247 = vector.load %arg1[%c2, %c0_30, %c0_31] : memref<8x7x25xf32, #tpu.memory_space<vmem>>, vector<1x7x25xf32>
    %248 = vector.shape_cast %247 : vector<1x7x25xf32> to vector<7x25xf32>
    %c2_32 = arith.constant 2 : index
    %c0_33 = arith.constant 0 : index
    %c0_34 = arith.constant 0 : index
    %249 = vector.load %arg2[%c2_32, %c0_33, %c0_34] : memref<8x7x25xf32, #tpu.memory_space<vmem>>, vector<1x7x25xf32>
    %250 = vector.shape_cast %249 : vector<1x7x25xf32> to vector<7x25xf32>
    %251 = vector.extract_strided_slice %0 {offsets = [0, 0], sizes = [16, 1], strides = [1, 1]} : vector<16x7xf32> to vector<16x1xf32>
    %252 = vector.extract_strided_slice %248 {offsets = [0, 0], sizes = [1, 25], strides = [1, 1]} : vector<7x25xf32> to vector<1x25xf32>
    %253 = vector.broadcast %251 : vector<16x1xf32> to vector<16x25xf32>
    %254 = vector.broadcast %252 : vector<1x25xf32> to vector<16x25xf32>
    %255 = arith.mulf %253, %254 : vector<16x25xf32>
    %256 = vector.extract_strided_slice %0 {offsets = [0, 1], sizes = [16, 1], strides = [1, 1]} : vector<16x7xf32> to vector<16x1xf32>
    %257 = vector.extract_strided_slice %248 {offsets = [1, 0], sizes = [1, 25], strides = [1, 1]} : vector<7x25xf32> to vector<1x25xf32>
    %258 = vector.broadcast %256 : vector<16x1xf32> to vector<16x25xf32>
    %259 = vector.broadcast %257 : vector<1x25xf32> to vector<16x25xf32>
    %260 = arith.mulf %258, %259 : vector<16x25xf32>
    %261 = arith.addf %255, %260 : vector<16x25xf32>
    %262 = vector.extract_strided_slice %0 {offsets = [0, 2], sizes = [16, 1], strides = [1, 1]} : vector<16x7xf32> to vector<16x1xf32>
    %263 = vector.extract_strided_slice %248 {offsets = [2, 0], sizes = [1, 25], strides = [1, 1]} : vector<7x25xf32> to vector<1x25xf32>
    %264 = vector.broadcast %262 : vector<16x1xf32> to vector<16x25xf32>
    %265 = vector.broadcast %263 : vector<1x25xf32> to vector<16x25xf32>
    %266 = arith.mulf %264, %265 : vector<16x25xf32>
    %267 = arith.addf %261, %266 : vector<16x25xf32>
    %268 = vector.extract_strided_slice %0 {offsets = [0, 3], sizes = [16, 1], strides = [1, 1]} : vector<16x7xf32> to vector<16x1xf32>
    %269 = vector.extract_strided_slice %248 {offsets = [3, 0], sizes = [1, 25], strides = [1, 1]} : vector<7x25xf32> to vector<1x25xf32>
    %270 = vector.broadcast %268 : vector<16x1xf32> to vector<16x25xf32>
    %271 = vector.broadcast %269 : vector<1x25xf32> to vector<16x25xf32>
    %272 = arith.mulf %270, %271 : vector<16x25xf32>
    %273 = arith.addf %267, %272 : vector<16x25xf32>
    %274 = vector.extract_strided_slice %0 {offsets = [0, 4], sizes = [16, 1], strides = [1, 1]} : vector<16x7xf32> to vector<16x1xf32>
    %275 = vector.extract_strided_slice %248 {offsets = [4, 0], sizes = [1, 25], strides = [1, 1]} : vector<7x25xf32> to vector<1x25xf32>
    %276 = vector.broadcast %274 : vector<16x1xf32> to vector<16x25xf32>
    %277 = vector.broadcast %275 : vector<1x25xf32> to vector<16x25xf32>
    %278 = arith.mulf %276, %277 : vector<16x25xf32>
    %279 = arith.addf %273, %278 : vector<16x25xf32>
    %280 = vector.extract_strided_slice %0 {offsets = [0, 5], sizes = [16, 1], strides = [1, 1]} : vector<16x7xf32> to vector<16x1xf32>
    %281 = vector.extract_strided_slice %248 {offsets = [5, 0], sizes = [1, 25], strides = [1, 1]} : vector<7x25xf32> to vector<1x25xf32>
    %282 = vector.broadcast %280 : vector<16x1xf32> to vector<16x25xf32>
    %283 = vector.broadcast %281 : vector<1x25xf32> to vector<16x25xf32>
    %284 = arith.mulf %282, %283 : vector<16x25xf32>
    %285 = arith.addf %279, %284 : vector<16x25xf32>
    %286 = vector.extract_strided_slice %0 {offsets = [0, 6], sizes = [16, 1], strides = [1, 1]} : vector<16x7xf32> to vector<16x1xf32>
    %287 = vector.extract_strided_slice %248 {offsets = [6, 0], sizes = [1, 25], strides = [1, 1]} : vector<7x25xf32> to vector<1x25xf32>
    %288 = vector.broadcast %286 : vector<16x1xf32> to vector<16x25xf32>
    %289 = vector.broadcast %287 : vector<1x25xf32> to vector<16x25xf32>
    %290 = arith.mulf %288, %289 : vector<16x25xf32>
    %291 = arith.addf %285, %290 : vector<16x25xf32>
    %292 = vector.broadcast %1 : vector<16x1xf32> to vector<16x25xf32>
    %293 = arith.addf %291, %292 : vector<16x25xf32>
    %cst_35 = arith.constant 1.000000e+00 : f32
    %294 = vector.broadcast %cst_35 : f32 to vector<16x25xf32>
    %295 = arith.cmpf ogt, %293, %294 : vector<16x25xf32>
    %296 = arith.extui %295 : vector<16x25xi1> to vector<16x25xi32>
    %297 = arith.sitofp %296 : vector<16x25xi32> to vector<16x25xf32>
    %298 = vector.extract_strided_slice %0 {offsets = [0, 0], sizes = [16, 1], strides = [1, 1]} : vector<16x7xf32> to vector<16x1xf32>
    %299 = vector.extract_strided_slice %250 {offsets = [0, 0], sizes = [1, 25], strides = [1, 1]} : vector<7x25xf32> to vector<1x25xf32>
    %300 = vector.broadcast %298 : vector<16x1xf32> to vector<16x25xf32>
    %301 = vector.broadcast %299 : vector<1x25xf32> to vector<16x25xf32>
    %302 = arith.mulf %300, %301 : vector<16x25xf32>
    %303 = vector.extract_strided_slice %0 {offsets = [0, 1], sizes = [16, 1], strides = [1, 1]} : vector<16x7xf32> to vector<16x1xf32>
    %304 = vector.extract_strided_slice %250 {offsets = [1, 0], sizes = [1, 25], strides = [1, 1]} : vector<7x25xf32> to vector<1x25xf32>
    %305 = vector.broadcast %303 : vector<16x1xf32> to vector<16x25xf32>
    %306 = vector.broadcast %304 : vector<1x25xf32> to vector<16x25xf32>
    %307 = arith.mulf %305, %306 : vector<16x25xf32>
    %308 = arith.addf %302, %307 : vector<16x25xf32>
    %309 = vector.extract_strided_slice %0 {offsets = [0, 2], sizes = [16, 1], strides = [1, 1]} : vector<16x7xf32> to vector<16x1xf32>
    %310 = vector.extract_strided_slice %250 {offsets = [2, 0], sizes = [1, 25], strides = [1, 1]} : vector<7x25xf32> to vector<1x25xf32>
    %311 = vector.broadcast %309 : vector<16x1xf32> to vector<16x25xf32>
    %312 = vector.broadcast %310 : vector<1x25xf32> to vector<16x25xf32>
    %313 = arith.mulf %311, %312 : vector<16x25xf32>
    %314 = arith.addf %308, %313 : vector<16x25xf32>
    %315 = vector.extract_strided_slice %0 {offsets = [0, 3], sizes = [16, 1], strides = [1, 1]} : vector<16x7xf32> to vector<16x1xf32>
    %316 = vector.extract_strided_slice %250 {offsets = [3, 0], sizes = [1, 25], strides = [1, 1]} : vector<7x25xf32> to vector<1x25xf32>
    %317 = vector.broadcast %315 : vector<16x1xf32> to vector<16x25xf32>
    %318 = vector.broadcast %316 : vector<1x25xf32> to vector<16x25xf32>
    %319 = arith.mulf %317, %318 : vector<16x25xf32>
    %320 = arith.addf %314, %319 : vector<16x25xf32>
    %321 = vector.extract_strided_slice %0 {offsets = [0, 4], sizes = [16, 1], strides = [1, 1]} : vector<16x7xf32> to vector<16x1xf32>
    %322 = vector.extract_strided_slice %250 {offsets = [4, 0], sizes = [1, 25], strides = [1, 1]} : vector<7x25xf32> to vector<1x25xf32>
    %323 = vector.broadcast %321 : vector<16x1xf32> to vector<16x25xf32>
    %324 = vector.broadcast %322 : vector<1x25xf32> to vector<16x25xf32>
    %325 = arith.mulf %323, %324 : vector<16x25xf32>
    %326 = arith.addf %320, %325 : vector<16x25xf32>
    %327 = vector.extract_strided_slice %0 {offsets = [0, 5], sizes = [16, 1], strides = [1, 1]} : vector<16x7xf32> to vector<16x1xf32>
    %328 = vector.extract_strided_slice %250 {offsets = [5, 0], sizes = [1, 25], strides = [1, 1]} : vector<7x25xf32> to vector<1x25xf32>
    %329 = vector.broadcast %327 : vector<16x1xf32> to vector<16x25xf32>
    %330 = vector.broadcast %328 : vector<1x25xf32> to vector<16x25xf32>
    %331 = arith.mulf %329, %330 : vector<16x25xf32>
    %332 = arith.addf %326, %331 : vector<16x25xf32>
    %333 = vector.extract_strided_slice %0 {offsets = [0, 6], sizes = [16, 1], strides = [1, 1]} : vector<16x7xf32> to vector<16x1xf32>
    %334 = vector.extract_strided_slice %250 {offsets = [6, 0], sizes = [1, 25], strides = [1, 1]} : vector<7x25xf32> to vector<1x25xf32>
    %335 = vector.broadcast %333 : vector<16x1xf32> to vector<16x25xf32>
    %336 = vector.broadcast %334 : vector<1x25xf32> to vector<16x25xf32>
    %337 = arith.mulf %335, %336 : vector<16x25xf32>
    %338 = arith.addf %332, %337 : vector<16x25xf32>
    %339 = vector.broadcast %1 : vector<16x1xf32> to vector<16x25xf32>
    %340 = arith.addf %338, %339 : vector<16x25xf32>
    %cst_36 = arith.constant 1.000000e+00 : f32
    %341 = vector.broadcast %cst_36 : f32 to vector<16x25xf32>
    %342 = arith.cmpf ogt, %340, %341 : vector<16x25xf32>
    %343 = arith.extui %342 : vector<16x25xi1> to vector<16x25xi32>
    %344 = arith.sitofp %343 : vector<16x25xi32> to vector<16x25xf32>
    %345 = vector.extract_strided_slice %344 {offsets = [0, 0], sizes = [16, 24], strides = [1, 1]} : vector<16x25xf32> to vector<16x24xf32>
    %346 = tpu.concatenate %8, %345 in 1 : vector<16x1xf32>, vector<16x24xf32> -> vector<16x25xf32>
    %347 = arith.maximumf %297, %344 : vector<16x25xf32>
    %348 = arith.maximumf %347, %346 : vector<16x25xf32>
    %349 = arith.mulf %348, %3 : vector<16x25xf32>
    %350 = vector.shape_cast %349 : vector<16x25xf32> to vector<1x16x25xf32>
    %cst_37 = arith.constant dense<0.000000e+00> : vector<1xf32>
    %351 = vector.multi_reduction <add>, %350, %cst_37 [1, 2] : vector<1x16x25xf32> to vector<1xf32>
    %352 = vector.shape_cast %351 : vector<1xf32> to vector<1x1x1xf32>
    %353 = vector.extract %352[0, 0, 0] : f32 from vector<1x1x1xf32>
    %354 = vector.broadcast %353 : f32 to vector<1x1xf32>
    %355 = vector.broadcast %6 : f32 to vector<1x1xf32>
    %356 = arith.addf %354, %355 : vector<1x1xf32>
    %357 = arith.mulf %348, %5 : vector<16x25xf32>
    %358 = vector.shape_cast %357 : vector<16x25xf32> to vector<1x16x25xf32>
    %cst_38 = arith.constant dense<0.000000e+00> : vector<1xf32>
    %359 = vector.multi_reduction <add>, %358, %cst_38 [1, 2] : vector<1x16x25xf32> to vector<1xf32>
    %360 = vector.shape_cast %359 : vector<1xf32> to vector<1x1x1xf32>
    %361 = vector.extract %360[0, 0, 0] : f32 from vector<1x1x1xf32>
    %362 = vector.broadcast %361 : f32 to vector<1x1xf32>
    %363 = vector.broadcast %7 : f32 to vector<1x1xf32>
    %364 = arith.addf %362, %363 : vector<1x1xf32>
    %365 = tpu.concatenate %356, %364 in 1 : vector<1x1xf32>, vector<1x1xf32> -> vector<1x2xf32>
    %c3 = arith.constant 3 : index
    %c0_39 = arith.constant 0 : index
    %c0_40 = arith.constant 0 : index
    %366 = vector.load %arg1[%c3, %c0_39, %c0_40] : memref<8x7x25xf32, #tpu.memory_space<vmem>>, vector<1x7x25xf32>
    %367 = vector.shape_cast %366 : vector<1x7x25xf32> to vector<7x25xf32>
    %c3_41 = arith.constant 3 : index
    %c0_42 = arith.constant 0 : index
    %c0_43 = arith.constant 0 : index
    %368 = vector.load %arg2[%c3_41, %c0_42, %c0_43] : memref<8x7x25xf32, #tpu.memory_space<vmem>>, vector<1x7x25xf32>
    %369 = vector.shape_cast %368 : vector<1x7x25xf32> to vector<7x25xf32>
    %370 = vector.extract_strided_slice %0 {offsets = [0, 0], sizes = [16, 1], strides = [1, 1]} : vector<16x7xf32> to vector<16x1xf32>
    %371 = vector.extract_strided_slice %367 {offsets = [0, 0], sizes = [1, 25], strides = [1, 1]} : vector<7x25xf32> to vector<1x25xf32>
    %372 = vector.broadcast %370 : vector<16x1xf32> to vector<16x25xf32>
    %373 = vector.broadcast %371 : vector<1x25xf32> to vector<16x25xf32>
    %374 = arith.mulf %372, %373 : vector<16x25xf32>
    %375 = vector.extract_strided_slice %0 {offsets = [0, 1], sizes = [16, 1], strides = [1, 1]} : vector<16x7xf32> to vector<16x1xf32>
    %376 = vector.extract_strided_slice %367 {offsets = [1, 0], sizes = [1, 25], strides = [1, 1]} : vector<7x25xf32> to vector<1x25xf32>
    %377 = vector.broadcast %375 : vector<16x1xf32> to vector<16x25xf32>
    %378 = vector.broadcast %376 : vector<1x25xf32> to vector<16x25xf32>
    %379 = arith.mulf %377, %378 : vector<16x25xf32>
    %380 = arith.addf %374, %379 : vector<16x25xf32>
    %381 = vector.extract_strided_slice %0 {offsets = [0, 2], sizes = [16, 1], strides = [1, 1]} : vector<16x7xf32> to vector<16x1xf32>
    %382 = vector.extract_strided_slice %367 {offsets = [2, 0], sizes = [1, 25], strides = [1, 1]} : vector<7x25xf32> to vector<1x25xf32>
    %383 = vector.broadcast %381 : vector<16x1xf32> to vector<16x25xf32>
    %384 = vector.broadcast %382 : vector<1x25xf32> to vector<16x25xf32>
    %385 = arith.mulf %383, %384 : vector<16x25xf32>
    %386 = arith.addf %380, %385 : vector<16x25xf32>
    %387 = vector.extract_strided_slice %0 {offsets = [0, 3], sizes = [16, 1], strides = [1, 1]} : vector<16x7xf32> to vector<16x1xf32>
    %388 = vector.extract_strided_slice %367 {offsets = [3, 0], sizes = [1, 25], strides = [1, 1]} : vector<7x25xf32> to vector<1x25xf32>
    %389 = vector.broadcast %387 : vector<16x1xf32> to vector<16x25xf32>
    %390 = vector.broadcast %388 : vector<1x25xf32> to vector<16x25xf32>
    %391 = arith.mulf %389, %390 : vector<16x25xf32>
    %392 = arith.addf %386, %391 : vector<16x25xf32>
    %393 = vector.extract_strided_slice %0 {offsets = [0, 4], sizes = [16, 1], strides = [1, 1]} : vector<16x7xf32> to vector<16x1xf32>
    %394 = vector.extract_strided_slice %367 {offsets = [4, 0], sizes = [1, 25], strides = [1, 1]} : vector<7x25xf32> to vector<1x25xf32>
    %395 = vector.broadcast %393 : vector<16x1xf32> to vector<16x25xf32>
    %396 = vector.broadcast %394 : vector<1x25xf32> to vector<16x25xf32>
    %397 = arith.mulf %395, %396 : vector<16x25xf32>
    %398 = arith.addf %392, %397 : vector<16x25xf32>
    %399 = vector.extract_strided_slice %0 {offsets = [0, 5], sizes = [16, 1], strides = [1, 1]} : vector<16x7xf32> to vector<16x1xf32>
    %400 = vector.extract_strided_slice %367 {offsets = [5, 0], sizes = [1, 25], strides = [1, 1]} : vector<7x25xf32> to vector<1x25xf32>
    %401 = vector.broadcast %399 : vector<16x1xf32> to vector<16x25xf32>
    %402 = vector.broadcast %400 : vector<1x25xf32> to vector<16x25xf32>
    %403 = arith.mulf %401, %402 : vector<16x25xf32>
    %404 = arith.addf %398, %403 : vector<16x25xf32>
    %405 = vector.extract_strided_slice %0 {offsets = [0, 6], sizes = [16, 1], strides = [1, 1]} : vector<16x7xf32> to vector<16x1xf32>
    %406 = vector.extract_strided_slice %367 {offsets = [6, 0], sizes = [1, 25], strides = [1, 1]} : vector<7x25xf32> to vector<1x25xf32>
    %407 = vector.broadcast %405 : vector<16x1xf32> to vector<16x25xf32>
    %408 = vector.broadcast %406 : vector<1x25xf32> to vector<16x25xf32>
    %409 = arith.mulf %407, %408 : vector<16x25xf32>
    %410 = arith.addf %404, %409 : vector<16x25xf32>
    %411 = vector.broadcast %1 : vector<16x1xf32> to vector<16x25xf32>
    %412 = arith.addf %410, %411 : vector<16x25xf32>
    %cst_44 = arith.constant 1.000000e+00 : f32
    %413 = vector.broadcast %cst_44 : f32 to vector<16x25xf32>
    %414 = arith.cmpf ogt, %412, %413 : vector<16x25xf32>
    %415 = arith.extui %414 : vector<16x25xi1> to vector<16x25xi32>
    %416 = arith.sitofp %415 : vector<16x25xi32> to vector<16x25xf32>
    %417 = vector.extract_strided_slice %0 {offsets = [0, 0], sizes = [16, 1], strides = [1, 1]} : vector<16x7xf32> to vector<16x1xf32>
    %418 = vector.extract_strided_slice %369 {offsets = [0, 0], sizes = [1, 25], strides = [1, 1]} : vector<7x25xf32> to vector<1x25xf32>
    %419 = vector.broadcast %417 : vector<16x1xf32> to vector<16x25xf32>
    %420 = vector.broadcast %418 : vector<1x25xf32> to vector<16x25xf32>
    %421 = arith.mulf %419, %420 : vector<16x25xf32>
    %422 = vector.extract_strided_slice %0 {offsets = [0, 1], sizes = [16, 1], strides = [1, 1]} : vector<16x7xf32> to vector<16x1xf32>
    %423 = vector.extract_strided_slice %369 {offsets = [1, 0], sizes = [1, 25], strides = [1, 1]} : vector<7x25xf32> to vector<1x25xf32>
    %424 = vector.broadcast %422 : vector<16x1xf32> to vector<16x25xf32>
    %425 = vector.broadcast %423 : vector<1x25xf32> to vector<16x25xf32>
    %426 = arith.mulf %424, %425 : vector<16x25xf32>
    %427 = arith.addf %421, %426 : vector<16x25xf32>
    %428 = vector.extract_strided_slice %0 {offsets = [0, 2], sizes = [16, 1], strides = [1, 1]} : vector<16x7xf32> to vector<16x1xf32>
    %429 = vector.extract_strided_slice %369 {offsets = [2, 0], sizes = [1, 25], strides = [1, 1]} : vector<7x25xf32> to vector<1x25xf32>
    %430 = vector.broadcast %428 : vector<16x1xf32> to vector<16x25xf32>
    %431 = vector.broadcast %429 : vector<1x25xf32> to vector<16x25xf32>
    %432 = arith.mulf %430, %431 : vector<16x25xf32>
    %433 = arith.addf %427, %432 : vector<16x25xf32>
    %434 = vector.extract_strided_slice %0 {offsets = [0, 3], sizes = [16, 1], strides = [1, 1]} : vector<16x7xf32> to vector<16x1xf32>
    %435 = vector.extract_strided_slice %369 {offsets = [3, 0], sizes = [1, 25], strides = [1, 1]} : vector<7x25xf32> to vector<1x25xf32>
    %436 = vector.broadcast %434 : vector<16x1xf32> to vector<16x25xf32>
    %437 = vector.broadcast %435 : vector<1x25xf32> to vector<16x25xf32>
    %438 = arith.mulf %436, %437 : vector<16x25xf32>
    %439 = arith.addf %433, %438 : vector<16x25xf32>
    %440 = vector.extract_strided_slice %0 {offsets = [0, 4], sizes = [16, 1], strides = [1, 1]} : vector<16x7xf32> to vector<16x1xf32>
    %441 = vector.extract_strided_slice %369 {offsets = [4, 0], sizes = [1, 25], strides = [1, 1]} : vector<7x25xf32> to vector<1x25xf32>
    %442 = vector.broadcast %440 : vector<16x1xf32> to vector<16x25xf32>
    %443 = vector.broadcast %441 : vector<1x25xf32> to vector<16x25xf32>
    %444 = arith.mulf %442, %443 : vector<16x25xf32>
    %445 = arith.addf %439, %444 : vector<16x25xf32>
    %446 = vector.extract_strided_slice %0 {offsets = [0, 5], sizes = [16, 1], strides = [1, 1]} : vector<16x7xf32> to vector<16x1xf32>
    %447 = vector.extract_strided_slice %369 {offsets = [5, 0], sizes = [1, 25], strides = [1, 1]} : vector<7x25xf32> to vector<1x25xf32>
    %448 = vector.broadcast %446 : vector<16x1xf32> to vector<16x25xf32>
    %449 = vector.broadcast %447 : vector<1x25xf32> to vector<16x25xf32>
    %450 = arith.mulf %448, %449 : vector<16x25xf32>
    %451 = arith.addf %445, %450 : vector<16x25xf32>
    %452 = vector.extract_strided_slice %0 {offsets = [0, 6], sizes = [16, 1], strides = [1, 1]} : vector<16x7xf32> to vector<16x1xf32>
    %453 = vector.extract_strided_slice %369 {offsets = [6, 0], sizes = [1, 25], strides = [1, 1]} : vector<7x25xf32> to vector<1x25xf32>
    %454 = vector.broadcast %452 : vector<16x1xf32> to vector<16x25xf32>
    %455 = vector.broadcast %453 : vector<1x25xf32> to vector<16x25xf32>
    %456 = arith.mulf %454, %455 : vector<16x25xf32>
    %457 = arith.addf %451, %456 : vector<16x25xf32>
    %458 = vector.broadcast %1 : vector<16x1xf32> to vector<16x25xf32>
    %459 = arith.addf %457, %458 : vector<16x25xf32>
    %cst_45 = arith.constant 1.000000e+00 : f32
    %460 = vector.broadcast %cst_45 : f32 to vector<16x25xf32>
    %461 = arith.cmpf ogt, %459, %460 : vector<16x25xf32>
    %462 = arith.extui %461 : vector<16x25xi1> to vector<16x25xi32>
    %463 = arith.sitofp %462 : vector<16x25xi32> to vector<16x25xf32>
    %464 = vector.extract_strided_slice %463 {offsets = [0, 0], sizes = [16, 24], strides = [1, 1]} : vector<16x25xf32> to vector<16x24xf32>
    %465 = tpu.concatenate %8, %464 in 1 : vector<16x1xf32>, vector<16x24xf32> -> vector<16x25xf32>
    %466 = arith.maximumf %416, %463 : vector<16x25xf32>
    %467 = arith.maximumf %466, %465 : vector<16x25xf32>
    %468 = arith.mulf %467, %3 : vector<16x25xf32>
    %469 = vector.shape_cast %468 : vector<16x25xf32> to vector<1x16x25xf32>
    %cst_46 = arith.constant dense<0.000000e+00> : vector<1xf32>
    %470 = vector.multi_reduction <add>, %469, %cst_46 [1, 2] : vector<1x16x25xf32> to vector<1xf32>
    %471 = vector.shape_cast %470 : vector<1xf32> to vector<1x1x1xf32>
    %472 = vector.extract %471[0, 0, 0] : f32 from vector<1x1x1xf32>
    %473 = vector.broadcast %472 : f32 to vector<1x1xf32>
    %474 = vector.broadcast %6 : f32 to vector<1x1xf32>
    %475 = arith.addf %473, %474 : vector<1x1xf32>
    %476 = arith.mulf %467, %5 : vector<16x25xf32>
    %477 = vector.shape_cast %476 : vector<16x25xf32> to vector<1x16x25xf32>
    %cst_47 = arith.constant dense<0.000000e+00> : vector<1xf32>
    %478 = vector.multi_reduction <add>, %477, %cst_47 [1, 2] : vector<1x16x25xf32> to vector<1xf32>
    %479 = vector.shape_cast %478 : vector<1xf32> to vector<1x1x1xf32>
    %480 = vector.extract %479[0, 0, 0] : f32 from vector<1x1x1xf32>
    %481 = vector.broadcast %480 : f32 to vector<1x1xf32>
    %482 = vector.broadcast %7 : f32 to vector<1x1xf32>
    %483 = arith.addf %481, %482 : vector<1x1xf32>
    %484 = tpu.concatenate %475, %483 in 1 : vector<1x1xf32>, vector<1x1xf32> -> vector<1x2xf32>
    %c4 = arith.constant 4 : index
    %c0_48 = arith.constant 0 : index
    %c0_49 = arith.constant 0 : index
    %485 = vector.load %arg1[%c4, %c0_48, %c0_49] : memref<8x7x25xf32, #tpu.memory_space<vmem>>, vector<1x7x25xf32>
    %486 = vector.shape_cast %485 : vector<1x7x25xf32> to vector<7x25xf32>
    %c4_50 = arith.constant 4 : index
    %c0_51 = arith.constant 0 : index
    %c0_52 = arith.constant 0 : index
    %487 = vector.load %arg2[%c4_50, %c0_51, %c0_52] : memref<8x7x25xf32, #tpu.memory_space<vmem>>, vector<1x7x25xf32>
    %488 = vector.shape_cast %487 : vector<1x7x25xf32> to vector<7x25xf32>
    %489 = vector.extract_strided_slice %0 {offsets = [0, 0], sizes = [16, 1], strides = [1, 1]} : vector<16x7xf32> to vector<16x1xf32>
    %490 = vector.extract_strided_slice %486 {offsets = [0, 0], sizes = [1, 25], strides = [1, 1]} : vector<7x25xf32> to vector<1x25xf32>
    %491 = vector.broadcast %489 : vector<16x1xf32> to vector<16x25xf32>
    %492 = vector.broadcast %490 : vector<1x25xf32> to vector<16x25xf32>
    %493 = arith.mulf %491, %492 : vector<16x25xf32>
    %494 = vector.extract_strided_slice %0 {offsets = [0, 1], sizes = [16, 1], strides = [1, 1]} : vector<16x7xf32> to vector<16x1xf32>
    %495 = vector.extract_strided_slice %486 {offsets = [1, 0], sizes = [1, 25], strides = [1, 1]} : vector<7x25xf32> to vector<1x25xf32>
    %496 = vector.broadcast %494 : vector<16x1xf32> to vector<16x25xf32>
    %497 = vector.broadcast %495 : vector<1x25xf32> to vector<16x25xf32>
    %498 = arith.mulf %496, %497 : vector<16x25xf32>
    %499 = arith.addf %493, %498 : vector<16x25xf32>
    %500 = vector.extract_strided_slice %0 {offsets = [0, 2], sizes = [16, 1], strides = [1, 1]} : vector<16x7xf32> to vector<16x1xf32>
    %501 = vector.extract_strided_slice %486 {offsets = [2, 0], sizes = [1, 25], strides = [1, 1]} : vector<7x25xf32> to vector<1x25xf32>
    %502 = vector.broadcast %500 : vector<16x1xf32> to vector<16x25xf32>
    %503 = vector.broadcast %501 : vector<1x25xf32> to vector<16x25xf32>
    %504 = arith.mulf %502, %503 : vector<16x25xf32>
    %505 = arith.addf %499, %504 : vector<16x25xf32>
    %506 = vector.extract_strided_slice %0 {offsets = [0, 3], sizes = [16, 1], strides = [1, 1]} : vector<16x7xf32> to vector<16x1xf32>
    %507 = vector.extract_strided_slice %486 {offsets = [3, 0], sizes = [1, 25], strides = [1, 1]} : vector<7x25xf32> to vector<1x25xf32>
    %508 = vector.broadcast %506 : vector<16x1xf32> to vector<16x25xf32>
    %509 = vector.broadcast %507 : vector<1x25xf32> to vector<16x25xf32>
    %510 = arith.mulf %508, %509 : vector<16x25xf32>
    %511 = arith.addf %505, %510 : vector<16x25xf32>
    %512 = vector.extract_strided_slice %0 {offsets = [0, 4], sizes = [16, 1], strides = [1, 1]} : vector<16x7xf32> to vector<16x1xf32>
    %513 = vector.extract_strided_slice %486 {offsets = [4, 0], sizes = [1, 25], strides = [1, 1]} : vector<7x25xf32> to vector<1x25xf32>
    %514 = vector.broadcast %512 : vector<16x1xf32> to vector<16x25xf32>
    %515 = vector.broadcast %513 : vector<1x25xf32> to vector<16x25xf32>
    %516 = arith.mulf %514, %515 : vector<16x25xf32>
    %517 = arith.addf %511, %516 : vector<16x25xf32>
    %518 = vector.extract_strided_slice %0 {offsets = [0, 5], sizes = [16, 1], strides = [1, 1]} : vector<16x7xf32> to vector<16x1xf32>
    %519 = vector.extract_strided_slice %486 {offsets = [5, 0], sizes = [1, 25], strides = [1, 1]} : vector<7x25xf32> to vector<1x25xf32>
    %520 = vector.broadcast %518 : vector<16x1xf32> to vector<16x25xf32>
    %521 = vector.broadcast %519 : vector<1x25xf32> to vector<16x25xf32>
    %522 = arith.mulf %520, %521 : vector<16x25xf32>
    %523 = arith.addf %517, %522 : vector<16x25xf32>
    %524 = vector.extract_strided_slice %0 {offsets = [0, 6], sizes = [16, 1], strides = [1, 1]} : vector<16x7xf32> to vector<16x1xf32>
    %525 = vector.extract_strided_slice %486 {offsets = [6, 0], sizes = [1, 25], strides = [1, 1]} : vector<7x25xf32> to vector<1x25xf32>
    %526 = vector.broadcast %524 : vector<16x1xf32> to vector<16x25xf32>
    %527 = vector.broadcast %525 : vector<1x25xf32> to vector<16x25xf32>
    %528 = arith.mulf %526, %527 : vector<16x25xf32>
    %529 = arith.addf %523, %528 : vector<16x25xf32>
    %530 = vector.broadcast %1 : vector<16x1xf32> to vector<16x25xf32>
    %531 = arith.addf %529, %530 : vector<16x25xf32>
    %cst_53 = arith.constant 1.000000e+00 : f32
    %532 = vector.broadcast %cst_53 : f32 to vector<16x25xf32>
    %533 = arith.cmpf ogt, %531, %532 : vector<16x25xf32>
    %534 = arith.extui %533 : vector<16x25xi1> to vector<16x25xi32>
    %535 = arith.sitofp %534 : vector<16x25xi32> to vector<16x25xf32>
    %536 = vector.extract_strided_slice %0 {offsets = [0, 0], sizes = [16, 1], strides = [1, 1]} : vector<16x7xf32> to vector<16x1xf32>
    %537 = vector.extract_strided_slice %488 {offsets = [0, 0], sizes = [1, 25], strides = [1, 1]} : vector<7x25xf32> to vector<1x25xf32>
    %538 = vector.broadcast %536 : vector<16x1xf32> to vector<16x25xf32>
    %539 = vector.broadcast %537 : vector<1x25xf32> to vector<16x25xf32>
    %540 = arith.mulf %538, %539 : vector<16x25xf32>
    %541 = vector.extract_strided_slice %0 {offsets = [0, 1], sizes = [16, 1], strides = [1, 1]} : vector<16x7xf32> to vector<16x1xf32>
    %542 = vector.extract_strided_slice %488 {offsets = [1, 0], sizes = [1, 25], strides = [1, 1]} : vector<7x25xf32> to vector<1x25xf32>
    %543 = vector.broadcast %541 : vector<16x1xf32> to vector<16x25xf32>
    %544 = vector.broadcast %542 : vector<1x25xf32> to vector<16x25xf32>
    %545 = arith.mulf %543, %544 : vector<16x25xf32>
    %546 = arith.addf %540, %545 : vector<16x25xf32>
    %547 = vector.extract_strided_slice %0 {offsets = [0, 2], sizes = [16, 1], strides = [1, 1]} : vector<16x7xf32> to vector<16x1xf32>
    %548 = vector.extract_strided_slice %488 {offsets = [2, 0], sizes = [1, 25], strides = [1, 1]} : vector<7x25xf32> to vector<1x25xf32>
    %549 = vector.broadcast %547 : vector<16x1xf32> to vector<16x25xf32>
    %550 = vector.broadcast %548 : vector<1x25xf32> to vector<16x25xf32>
    %551 = arith.mulf %549, %550 : vector<16x25xf32>
    %552 = arith.addf %546, %551 : vector<16x25xf32>
    %553 = vector.extract_strided_slice %0 {offsets = [0, 3], sizes = [16, 1], strides = [1, 1]} : vector<16x7xf32> to vector<16x1xf32>
    %554 = vector.extract_strided_slice %488 {offsets = [3, 0], sizes = [1, 25], strides = [1, 1]} : vector<7x25xf32> to vector<1x25xf32>
    %555 = vector.broadcast %553 : vector<16x1xf32> to vector<16x25xf32>
    %556 = vector.broadcast %554 : vector<1x25xf32> to vector<16x25xf32>
    %557 = arith.mulf %555, %556 : vector<16x25xf32>
    %558 = arith.addf %552, %557 : vector<16x25xf32>
    %559 = vector.extract_strided_slice %0 {offsets = [0, 4], sizes = [16, 1], strides = [1, 1]} : vector<16x7xf32> to vector<16x1xf32>
    %560 = vector.extract_strided_slice %488 {offsets = [4, 0], sizes = [1, 25], strides = [1, 1]} : vector<7x25xf32> to vector<1x25xf32>
    %561 = vector.broadcast %559 : vector<16x1xf32> to vector<16x25xf32>
    %562 = vector.broadcast %560 : vector<1x25xf32> to vector<16x25xf32>
    %563 = arith.mulf %561, %562 : vector<16x25xf32>
    %564 = arith.addf %558, %563 : vector<16x25xf32>
    %565 = vector.extract_strided_slice %0 {offsets = [0, 5], sizes = [16, 1], strides = [1, 1]} : vector<16x7xf32> to vector<16x1xf32>
    %566 = vector.extract_strided_slice %488 {offsets = [5, 0], sizes = [1, 25], strides = [1, 1]} : vector<7x25xf32> to vector<1x25xf32>
    %567 = vector.broadcast %565 : vector<16x1xf32> to vector<16x25xf32>
    %568 = vector.broadcast %566 : vector<1x25xf32> to vector<16x25xf32>
    %569 = arith.mulf %567, %568 : vector<16x25xf32>
    %570 = arith.addf %564, %569 : vector<16x25xf32>
    %571 = vector.extract_strided_slice %0 {offsets = [0, 6], sizes = [16, 1], strides = [1, 1]} : vector<16x7xf32> to vector<16x1xf32>
    %572 = vector.extract_strided_slice %488 {offsets = [6, 0], sizes = [1, 25], strides = [1, 1]} : vector<7x25xf32> to vector<1x25xf32>
    %573 = vector.broadcast %571 : vector<16x1xf32> to vector<16x25xf32>
    %574 = vector.broadcast %572 : vector<1x25xf32> to vector<16x25xf32>
    %575 = arith.mulf %573, %574 : vector<16x25xf32>
    %576 = arith.addf %570, %575 : vector<16x25xf32>
    %577 = vector.broadcast %1 : vector<16x1xf32> to vector<16x25xf32>
    %578 = arith.addf %576, %577 : vector<16x25xf32>
    %cst_54 = arith.constant 1.000000e+00 : f32
    %579 = vector.broadcast %cst_54 : f32 to vector<16x25xf32>
    %580 = arith.cmpf ogt, %578, %579 : vector<16x25xf32>
    %581 = arith.extui %580 : vector<16x25xi1> to vector<16x25xi32>
    %582 = arith.sitofp %581 : vector<16x25xi32> to vector<16x25xf32>
    %583 = vector.extract_strided_slice %582 {offsets = [0, 0], sizes = [16, 24], strides = [1, 1]} : vector<16x25xf32> to vector<16x24xf32>
    %584 = tpu.concatenate %8, %583 in 1 : vector<16x1xf32>, vector<16x24xf32> -> vector<16x25xf32>
    %585 = arith.maximumf %535, %582 : vector<16x25xf32>
    %586 = arith.maximumf %585, %584 : vector<16x25xf32>
    %587 = arith.mulf %586, %3 : vector<16x25xf32>
    %588 = vector.shape_cast %587 : vector<16x25xf32> to vector<1x16x25xf32>
    %cst_55 = arith.constant dense<0.000000e+00> : vector<1xf32>
    %589 = vector.multi_reduction <add>, %588, %cst_55 [1, 2] : vector<1x16x25xf32> to vector<1xf32>
    %590 = vector.shape_cast %589 : vector<1xf32> to vector<1x1x1xf32>
    %591 = vector.extract %590[0, 0, 0] : f32 from vector<1x1x1xf32>
    %592 = vector.broadcast %591 : f32 to vector<1x1xf32>
    %593 = vector.broadcast %6 : f32 to vector<1x1xf32>
    %594 = arith.addf %592, %593 : vector<1x1xf32>
    %595 = arith.mulf %586, %5 : vector<16x25xf32>
    %596 = vector.shape_cast %595 : vector<16x25xf32> to vector<1x16x25xf32>
    %cst_56 = arith.constant dense<0.000000e+00> : vector<1xf32>
    %597 = vector.multi_reduction <add>, %596, %cst_56 [1, 2] : vector<1x16x25xf32> to vector<1xf32>
    %598 = vector.shape_cast %597 : vector<1xf32> to vector<1x1x1xf32>
    %599 = vector.extract %598[0, 0, 0] : f32 from vector<1x1x1xf32>
    %600 = vector.broadcast %599 : f32 to vector<1x1xf32>
    %601 = vector.broadcast %7 : f32 to vector<1x1xf32>
    %602 = arith.addf %600, %601 : vector<1x1xf32>
    %603 = tpu.concatenate %594, %602 in 1 : vector<1x1xf32>, vector<1x1xf32> -> vector<1x2xf32>
    %c5 = arith.constant 5 : index
    %c0_57 = arith.constant 0 : index
    %c0_58 = arith.constant 0 : index
    %604 = vector.load %arg1[%c5, %c0_57, %c0_58] : memref<8x7x25xf32, #tpu.memory_space<vmem>>, vector<1x7x25xf32>
    %605 = vector.shape_cast %604 : vector<1x7x25xf32> to vector<7x25xf32>
    %c5_59 = arith.constant 5 : index
    %c0_60 = arith.constant 0 : index
    %c0_61 = arith.constant 0 : index
    %606 = vector.load %arg2[%c5_59, %c0_60, %c0_61] : memref<8x7x25xf32, #tpu.memory_space<vmem>>, vector<1x7x25xf32>
    %607 = vector.shape_cast %606 : vector<1x7x25xf32> to vector<7x25xf32>
    %608 = vector.extract_strided_slice %0 {offsets = [0, 0], sizes = [16, 1], strides = [1, 1]} : vector<16x7xf32> to vector<16x1xf32>
    %609 = vector.extract_strided_slice %605 {offsets = [0, 0], sizes = [1, 25], strides = [1, 1]} : vector<7x25xf32> to vector<1x25xf32>
    %610 = vector.broadcast %608 : vector<16x1xf32> to vector<16x25xf32>
    %611 = vector.broadcast %609 : vector<1x25xf32> to vector<16x25xf32>
    %612 = arith.mulf %610, %611 : vector<16x25xf32>
    %613 = vector.extract_strided_slice %0 {offsets = [0, 1], sizes = [16, 1], strides = [1, 1]} : vector<16x7xf32> to vector<16x1xf32>
    %614 = vector.extract_strided_slice %605 {offsets = [1, 0], sizes = [1, 25], strides = [1, 1]} : vector<7x25xf32> to vector<1x25xf32>
    %615 = vector.broadcast %613 : vector<16x1xf32> to vector<16x25xf32>
    %616 = vector.broadcast %614 : vector<1x25xf32> to vector<16x25xf32>
    %617 = arith.mulf %615, %616 : vector<16x25xf32>
    %618 = arith.addf %612, %617 : vector<16x25xf32>
    %619 = vector.extract_strided_slice %0 {offsets = [0, 2], sizes = [16, 1], strides = [1, 1]} : vector<16x7xf32> to vector<16x1xf32>
    %620 = vector.extract_strided_slice %605 {offsets = [2, 0], sizes = [1, 25], strides = [1, 1]} : vector<7x25xf32> to vector<1x25xf32>
    %621 = vector.broadcast %619 : vector<16x1xf32> to vector<16x25xf32>
    %622 = vector.broadcast %620 : vector<1x25xf32> to vector<16x25xf32>
    %623 = arith.mulf %621, %622 : vector<16x25xf32>
    %624 = arith.addf %618, %623 : vector<16x25xf32>
    %625 = vector.extract_strided_slice %0 {offsets = [0, 3], sizes = [16, 1], strides = [1, 1]} : vector<16x7xf32> to vector<16x1xf32>
    %626 = vector.extract_strided_slice %605 {offsets = [3, 0], sizes = [1, 25], strides = [1, 1]} : vector<7x25xf32> to vector<1x25xf32>
    %627 = vector.broadcast %625 : vector<16x1xf32> to vector<16x25xf32>
    %628 = vector.broadcast %626 : vector<1x25xf32> to vector<16x25xf32>
    %629 = arith.mulf %627, %628 : vector<16x25xf32>
    %630 = arith.addf %624, %629 : vector<16x25xf32>
    %631 = vector.extract_strided_slice %0 {offsets = [0, 4], sizes = [16, 1], strides = [1, 1]} : vector<16x7xf32> to vector<16x1xf32>
    %632 = vector.extract_strided_slice %605 {offsets = [4, 0], sizes = [1, 25], strides = [1, 1]} : vector<7x25xf32> to vector<1x25xf32>
    %633 = vector.broadcast %631 : vector<16x1xf32> to vector<16x25xf32>
    %634 = vector.broadcast %632 : vector<1x25xf32> to vector<16x25xf32>
    %635 = arith.mulf %633, %634 : vector<16x25xf32>
    %636 = arith.addf %630, %635 : vector<16x25xf32>
    %637 = vector.extract_strided_slice %0 {offsets = [0, 5], sizes = [16, 1], strides = [1, 1]} : vector<16x7xf32> to vector<16x1xf32>
    %638 = vector.extract_strided_slice %605 {offsets = [5, 0], sizes = [1, 25], strides = [1, 1]} : vector<7x25xf32> to vector<1x25xf32>
    %639 = vector.broadcast %637 : vector<16x1xf32> to vector<16x25xf32>
    %640 = vector.broadcast %638 : vector<1x25xf32> to vector<16x25xf32>
    %641 = arith.mulf %639, %640 : vector<16x25xf32>
    %642 = arith.addf %636, %641 : vector<16x25xf32>
    %643 = vector.extract_strided_slice %0 {offsets = [0, 6], sizes = [16, 1], strides = [1, 1]} : vector<16x7xf32> to vector<16x1xf32>
    %644 = vector.extract_strided_slice %605 {offsets = [6, 0], sizes = [1, 25], strides = [1, 1]} : vector<7x25xf32> to vector<1x25xf32>
    %645 = vector.broadcast %643 : vector<16x1xf32> to vector<16x25xf32>
    %646 = vector.broadcast %644 : vector<1x25xf32> to vector<16x25xf32>
    %647 = arith.mulf %645, %646 : vector<16x25xf32>
    %648 = arith.addf %642, %647 : vector<16x25xf32>
    %649 = vector.broadcast %1 : vector<16x1xf32> to vector<16x25xf32>
    %650 = arith.addf %648, %649 : vector<16x25xf32>
    %cst_62 = arith.constant 1.000000e+00 : f32
    %651 = vector.broadcast %cst_62 : f32 to vector<16x25xf32>
    %652 = arith.cmpf ogt, %650, %651 : vector<16x25xf32>
    %653 = arith.extui %652 : vector<16x25xi1> to vector<16x25xi32>
    %654 = arith.sitofp %653 : vector<16x25xi32> to vector<16x25xf32>
    %655 = vector.extract_strided_slice %0 {offsets = [0, 0], sizes = [16, 1], strides = [1, 1]} : vector<16x7xf32> to vector<16x1xf32>
    %656 = vector.extract_strided_slice %607 {offsets = [0, 0], sizes = [1, 25], strides = [1, 1]} : vector<7x25xf32> to vector<1x25xf32>
    %657 = vector.broadcast %655 : vector<16x1xf32> to vector<16x25xf32>
    %658 = vector.broadcast %656 : vector<1x25xf32> to vector<16x25xf32>
    %659 = arith.mulf %657, %658 : vector<16x25xf32>
    %660 = vector.extract_strided_slice %0 {offsets = [0, 1], sizes = [16, 1], strides = [1, 1]} : vector<16x7xf32> to vector<16x1xf32>
    %661 = vector.extract_strided_slice %607 {offsets = [1, 0], sizes = [1, 25], strides = [1, 1]} : vector<7x25xf32> to vector<1x25xf32>
    %662 = vector.broadcast %660 : vector<16x1xf32> to vector<16x25xf32>
    %663 = vector.broadcast %661 : vector<1x25xf32> to vector<16x25xf32>
    %664 = arith.mulf %662, %663 : vector<16x25xf32>
    %665 = arith.addf %659, %664 : vector<16x25xf32>
    %666 = vector.extract_strided_slice %0 {offsets = [0, 2], sizes = [16, 1], strides = [1, 1]} : vector<16x7xf32> to vector<16x1xf32>
    %667 = vector.extract_strided_slice %607 {offsets = [2, 0], sizes = [1, 25], strides = [1, 1]} : vector<7x25xf32> to vector<1x25xf32>
    %668 = vector.broadcast %666 : vector<16x1xf32> to vector<16x25xf32>
    %669 = vector.broadcast %667 : vector<1x25xf32> to vector<16x25xf32>
    %670 = arith.mulf %668, %669 : vector<16x25xf32>
    %671 = arith.addf %665, %670 : vector<16x25xf32>
    %672 = vector.extract_strided_slice %0 {offsets = [0, 3], sizes = [16, 1], strides = [1, 1]} : vector<16x7xf32> to vector<16x1xf32>
    %673 = vector.extract_strided_slice %607 {offsets = [3, 0], sizes = [1, 25], strides = [1, 1]} : vector<7x25xf32> to vector<1x25xf32>
    %674 = vector.broadcast %672 : vector<16x1xf32> to vector<16x25xf32>
    %675 = vector.broadcast %673 : vector<1x25xf32> to vector<16x25xf32>
    %676 = arith.mulf %674, %675 : vector<16x25xf32>
    %677 = arith.addf %671, %676 : vector<16x25xf32>
    %678 = vector.extract_strided_slice %0 {offsets = [0, 4], sizes = [16, 1], strides = [1, 1]} : vector<16x7xf32> to vector<16x1xf32>
    %679 = vector.extract_strided_slice %607 {offsets = [4, 0], sizes = [1, 25], strides = [1, 1]} : vector<7x25xf32> to vector<1x25xf32>
    %680 = vector.broadcast %678 : vector<16x1xf32> to vector<16x25xf32>
    %681 = vector.broadcast %679 : vector<1x25xf32> to vector<16x25xf32>
    %682 = arith.mulf %680, %681 : vector<16x25xf32>
    %683 = arith.addf %677, %682 : vector<16x25xf32>
    %684 = vector.extract_strided_slice %0 {offsets = [0, 5], sizes = [16, 1], strides = [1, 1]} : vector<16x7xf32> to vector<16x1xf32>
    %685 = vector.extract_strided_slice %607 {offsets = [5, 0], sizes = [1, 25], strides = [1, 1]} : vector<7x25xf32> to vector<1x25xf32>
    %686 = vector.broadcast %684 : vector<16x1xf32> to vector<16x25xf32>
    %687 = vector.broadcast %685 : vector<1x25xf32> to vector<16x25xf32>
    %688 = arith.mulf %686, %687 : vector<16x25xf32>
    %689 = arith.addf %683, %688 : vector<16x25xf32>
    %690 = vector.extract_strided_slice %0 {offsets = [0, 6], sizes = [16, 1], strides = [1, 1]} : vector<16x7xf32> to vector<16x1xf32>
    %691 = vector.extract_strided_slice %607 {offsets = [6, 0], sizes = [1, 25], strides = [1, 1]} : vector<7x25xf32> to vector<1x25xf32>
    %692 = vector.broadcast %690 : vector<16x1xf32> to vector<16x25xf32>
    %693 = vector.broadcast %691 : vector<1x25xf32> to vector<16x25xf32>
    %694 = arith.mulf %692, %693 : vector<16x25xf32>
    %695 = arith.addf %689, %694 : vector<16x25xf32>
    %696 = vector.broadcast %1 : vector<16x1xf32> to vector<16x25xf32>
    %697 = arith.addf %695, %696 : vector<16x25xf32>
    %cst_63 = arith.constant 1.000000e+00 : f32
    %698 = vector.broadcast %cst_63 : f32 to vector<16x25xf32>
    %699 = arith.cmpf ogt, %697, %698 : vector<16x25xf32>
    %700 = arith.extui %699 : vector<16x25xi1> to vector<16x25xi32>
    %701 = arith.sitofp %700 : vector<16x25xi32> to vector<16x25xf32>
    %702 = vector.extract_strided_slice %701 {offsets = [0, 0], sizes = [16, 24], strides = [1, 1]} : vector<16x25xf32> to vector<16x24xf32>
    %703 = tpu.concatenate %8, %702 in 1 : vector<16x1xf32>, vector<16x24xf32> -> vector<16x25xf32>
    %704 = arith.maximumf %654, %701 : vector<16x25xf32>
    %705 = arith.maximumf %704, %703 : vector<16x25xf32>
    %706 = arith.mulf %705, %3 : vector<16x25xf32>
    %707 = vector.shape_cast %706 : vector<16x25xf32> to vector<1x16x25xf32>
    %cst_64 = arith.constant dense<0.000000e+00> : vector<1xf32>
    %708 = vector.multi_reduction <add>, %707, %cst_64 [1, 2] : vector<1x16x25xf32> to vector<1xf32>
    %709 = vector.shape_cast %708 : vector<1xf32> to vector<1x1x1xf32>
    %710 = vector.extract %709[0, 0, 0] : f32 from vector<1x1x1xf32>
    %711 = vector.broadcast %710 : f32 to vector<1x1xf32>
    %712 = vector.broadcast %6 : f32 to vector<1x1xf32>
    %713 = arith.addf %711, %712 : vector<1x1xf32>
    %714 = arith.mulf %705, %5 : vector<16x25xf32>
    %715 = vector.shape_cast %714 : vector<16x25xf32> to vector<1x16x25xf32>
    %cst_65 = arith.constant dense<0.000000e+00> : vector<1xf32>
    %716 = vector.multi_reduction <add>, %715, %cst_65 [1, 2] : vector<1x16x25xf32> to vector<1xf32>
    %717 = vector.shape_cast %716 : vector<1xf32> to vector<1x1x1xf32>
    %718 = vector.extract %717[0, 0, 0] : f32 from vector<1x1x1xf32>
    %719 = vector.broadcast %718 : f32 to vector<1x1xf32>
    %720 = vector.broadcast %7 : f32 to vector<1x1xf32>
    %721 = arith.addf %719, %720 : vector<1x1xf32>
    %722 = tpu.concatenate %713, %721 in 1 : vector<1x1xf32>, vector<1x1xf32> -> vector<1x2xf32>
    %c6 = arith.constant 6 : index
    %c0_66 = arith.constant 0 : index
    %c0_67 = arith.constant 0 : index
    %723 = vector.load %arg1[%c6, %c0_66, %c0_67] : memref<8x7x25xf32, #tpu.memory_space<vmem>>, vector<1x7x25xf32>
    %724 = vector.shape_cast %723 : vector<1x7x25xf32> to vector<7x25xf32>
    %c6_68 = arith.constant 6 : index
    %c0_69 = arith.constant 0 : index
    %c0_70 = arith.constant 0 : index
    %725 = vector.load %arg2[%c6_68, %c0_69, %c0_70] : memref<8x7x25xf32, #tpu.memory_space<vmem>>, vector<1x7x25xf32>
    %726 = vector.shape_cast %725 : vector<1x7x25xf32> to vector<7x25xf32>
    %727 = vector.extract_strided_slice %0 {offsets = [0, 0], sizes = [16, 1], strides = [1, 1]} : vector<16x7xf32> to vector<16x1xf32>
    %728 = vector.extract_strided_slice %724 {offsets = [0, 0], sizes = [1, 25], strides = [1, 1]} : vector<7x25xf32> to vector<1x25xf32>
    %729 = vector.broadcast %727 : vector<16x1xf32> to vector<16x25xf32>
    %730 = vector.broadcast %728 : vector<1x25xf32> to vector<16x25xf32>
    %731 = arith.mulf %729, %730 : vector<16x25xf32>
    %732 = vector.extract_strided_slice %0 {offsets = [0, 1], sizes = [16, 1], strides = [1, 1]} : vector<16x7xf32> to vector<16x1xf32>
    %733 = vector.extract_strided_slice %724 {offsets = [1, 0], sizes = [1, 25], strides = [1, 1]} : vector<7x25xf32> to vector<1x25xf32>
    %734 = vector.broadcast %732 : vector<16x1xf32> to vector<16x25xf32>
    %735 = vector.broadcast %733 : vector<1x25xf32> to vector<16x25xf32>
    %736 = arith.mulf %734, %735 : vector<16x25xf32>
    %737 = arith.addf %731, %736 : vector<16x25xf32>
    %738 = vector.extract_strided_slice %0 {offsets = [0, 2], sizes = [16, 1], strides = [1, 1]} : vector<16x7xf32> to vector<16x1xf32>
    %739 = vector.extract_strided_slice %724 {offsets = [2, 0], sizes = [1, 25], strides = [1, 1]} : vector<7x25xf32> to vector<1x25xf32>
    %740 = vector.broadcast %738 : vector<16x1xf32> to vector<16x25xf32>
    %741 = vector.broadcast %739 : vector<1x25xf32> to vector<16x25xf32>
    %742 = arith.mulf %740, %741 : vector<16x25xf32>
    %743 = arith.addf %737, %742 : vector<16x25xf32>
    %744 = vector.extract_strided_slice %0 {offsets = [0, 3], sizes = [16, 1], strides = [1, 1]} : vector<16x7xf32> to vector<16x1xf32>
    %745 = vector.extract_strided_slice %724 {offsets = [3, 0], sizes = [1, 25], strides = [1, 1]} : vector<7x25xf32> to vector<1x25xf32>
    %746 = vector.broadcast %744 : vector<16x1xf32> to vector<16x25xf32>
    %747 = vector.broadcast %745 : vector<1x25xf32> to vector<16x25xf32>
    %748 = arith.mulf %746, %747 : vector<16x25xf32>
    %749 = arith.addf %743, %748 : vector<16x25xf32>
    %750 = vector.extract_strided_slice %0 {offsets = [0, 4], sizes = [16, 1], strides = [1, 1]} : vector<16x7xf32> to vector<16x1xf32>
    %751 = vector.extract_strided_slice %724 {offsets = [4, 0], sizes = [1, 25], strides = [1, 1]} : vector<7x25xf32> to vector<1x25xf32>
    %752 = vector.broadcast %750 : vector<16x1xf32> to vector<16x25xf32>
    %753 = vector.broadcast %751 : vector<1x25xf32> to vector<16x25xf32>
    %754 = arith.mulf %752, %753 : vector<16x25xf32>
    %755 = arith.addf %749, %754 : vector<16x25xf32>
    %756 = vector.extract_strided_slice %0 {offsets = [0, 5], sizes = [16, 1], strides = [1, 1]} : vector<16x7xf32> to vector<16x1xf32>
    %757 = vector.extract_strided_slice %724 {offsets = [5, 0], sizes = [1, 25], strides = [1, 1]} : vector<7x25xf32> to vector<1x25xf32>
    %758 = vector.broadcast %756 : vector<16x1xf32> to vector<16x25xf32>
    %759 = vector.broadcast %757 : vector<1x25xf32> to vector<16x25xf32>
    %760 = arith.mulf %758, %759 : vector<16x25xf32>
    %761 = arith.addf %755, %760 : vector<16x25xf32>
    %762 = vector.extract_strided_slice %0 {offsets = [0, 6], sizes = [16, 1], strides = [1, 1]} : vector<16x7xf32> to vector<16x1xf32>
    %763 = vector.extract_strided_slice %724 {offsets = [6, 0], sizes = [1, 25], strides = [1, 1]} : vector<7x25xf32> to vector<1x25xf32>
    %764 = vector.broadcast %762 : vector<16x1xf32> to vector<16x25xf32>
    %765 = vector.broadcast %763 : vector<1x25xf32> to vector<16x25xf32>
    %766 = arith.mulf %764, %765 : vector<16x25xf32>
    %767 = arith.addf %761, %766 : vector<16x25xf32>
    %768 = vector.broadcast %1 : vector<16x1xf32> to vector<16x25xf32>
    %769 = arith.addf %767, %768 : vector<16x25xf32>
    %cst_71 = arith.constant 1.000000e+00 : f32
    %770 = vector.broadcast %cst_71 : f32 to vector<16x25xf32>
    %771 = arith.cmpf ogt, %769, %770 : vector<16x25xf32>
    %772 = arith.extui %771 : vector<16x25xi1> to vector<16x25xi32>
    %773 = arith.sitofp %772 : vector<16x25xi32> to vector<16x25xf32>
    %774 = vector.extract_strided_slice %0 {offsets = [0, 0], sizes = [16, 1], strides = [1, 1]} : vector<16x7xf32> to vector<16x1xf32>
    %775 = vector.extract_strided_slice %726 {offsets = [0, 0], sizes = [1, 25], strides = [1, 1]} : vector<7x25xf32> to vector<1x25xf32>
    %776 = vector.broadcast %774 : vector<16x1xf32> to vector<16x25xf32>
    %777 = vector.broadcast %775 : vector<1x25xf32> to vector<16x25xf32>
    %778 = arith.mulf %776, %777 : vector<16x25xf32>
    %779 = vector.extract_strided_slice %0 {offsets = [0, 1], sizes = [16, 1], strides = [1, 1]} : vector<16x7xf32> to vector<16x1xf32>
    %780 = vector.extract_strided_slice %726 {offsets = [1, 0], sizes = [1, 25], strides = [1, 1]} : vector<7x25xf32> to vector<1x25xf32>
    %781 = vector.broadcast %779 : vector<16x1xf32> to vector<16x25xf32>
    %782 = vector.broadcast %780 : vector<1x25xf32> to vector<16x25xf32>
    %783 = arith.mulf %781, %782 : vector<16x25xf32>
    %784 = arith.addf %778, %783 : vector<16x25xf32>
    %785 = vector.extract_strided_slice %0 {offsets = [0, 2], sizes = [16, 1], strides = [1, 1]} : vector<16x7xf32> to vector<16x1xf32>
    %786 = vector.extract_strided_slice %726 {offsets = [2, 0], sizes = [1, 25], strides = [1, 1]} : vector<7x25xf32> to vector<1x25xf32>
    %787 = vector.broadcast %785 : vector<16x1xf32> to vector<16x25xf32>
    %788 = vector.broadcast %786 : vector<1x25xf32> to vector<16x25xf32>
    %789 = arith.mulf %787, %788 : vector<16x25xf32>
    %790 = arith.addf %784, %789 : vector<16x25xf32>
    %791 = vector.extract_strided_slice %0 {offsets = [0, 3], sizes = [16, 1], strides = [1, 1]} : vector<16x7xf32> to vector<16x1xf32>
    %792 = vector.extract_strided_slice %726 {offsets = [3, 0], sizes = [1, 25], strides = [1, 1]} : vector<7x25xf32> to vector<1x25xf32>
    %793 = vector.broadcast %791 : vector<16x1xf32> to vector<16x25xf32>
    %794 = vector.broadcast %792 : vector<1x25xf32> to vector<16x25xf32>
    %795 = arith.mulf %793, %794 : vector<16x25xf32>
    %796 = arith.addf %790, %795 : vector<16x25xf32>
    %797 = vector.extract_strided_slice %0 {offsets = [0, 4], sizes = [16, 1], strides = [1, 1]} : vector<16x7xf32> to vector<16x1xf32>
    %798 = vector.extract_strided_slice %726 {offsets = [4, 0], sizes = [1, 25], strides = [1, 1]} : vector<7x25xf32> to vector<1x25xf32>
    %799 = vector.broadcast %797 : vector<16x1xf32> to vector<16x25xf32>
    %800 = vector.broadcast %798 : vector<1x25xf32> to vector<16x25xf32>
    %801 = arith.mulf %799, %800 : vector<16x25xf32>
    %802 = arith.addf %796, %801 : vector<16x25xf32>
    %803 = vector.extract_strided_slice %0 {offsets = [0, 5], sizes = [16, 1], strides = [1, 1]} : vector<16x7xf32> to vector<16x1xf32>
    %804 = vector.extract_strided_slice %726 {offsets = [5, 0], sizes = [1, 25], strides = [1, 1]} : vector<7x25xf32> to vector<1x25xf32>
    %805 = vector.broadcast %803 : vector<16x1xf32> to vector<16x25xf32>
    %806 = vector.broadcast %804 : vector<1x25xf32> to vector<16x25xf32>
    %807 = arith.mulf %805, %806 : vector<16x25xf32>
    %808 = arith.addf %802, %807 : vector<16x25xf32>
    %809 = vector.extract_strided_slice %0 {offsets = [0, 6], sizes = [16, 1], strides = [1, 1]} : vector<16x7xf32> to vector<16x1xf32>
    %810 = vector.extract_strided_slice %726 {offsets = [6, 0], sizes = [1, 25], strides = [1, 1]} : vector<7x25xf32> to vector<1x25xf32>
    %811 = vector.broadcast %809 : vector<16x1xf32> to vector<16x25xf32>
    %812 = vector.broadcast %810 : vector<1x25xf32> to vector<16x25xf32>
    %813 = arith.mulf %811, %812 : vector<16x25xf32>
    %814 = arith.addf %808, %813 : vector<16x25xf32>
    %815 = vector.broadcast %1 : vector<16x1xf32> to vector<16x25xf32>
    %816 = arith.addf %814, %815 : vector<16x25xf32>
    %cst_72 = arith.constant 1.000000e+00 : f32
    %817 = vector.broadcast %cst_72 : f32 to vector<16x25xf32>
    %818 = arith.cmpf ogt, %816, %817 : vector<16x25xf32>
    %819 = arith.extui %818 : vector<16x25xi1> to vector<16x25xi32>
    %820 = arith.sitofp %819 : vector<16x25xi32> to vector<16x25xf32>
    %821 = vector.extract_strided_slice %820 {offsets = [0, 0], sizes = [16, 24], strides = [1, 1]} : vector<16x25xf32> to vector<16x24xf32>
    %822 = tpu.concatenate %8, %821 in 1 : vector<16x1xf32>, vector<16x24xf32> -> vector<16x25xf32>
    %823 = arith.maximumf %773, %820 : vector<16x25xf32>
    %824 = arith.maximumf %823, %822 : vector<16x25xf32>
    %825 = arith.mulf %824, %3 : vector<16x25xf32>
    %826 = vector.shape_cast %825 : vector<16x25xf32> to vector<1x16x25xf32>
    %cst_73 = arith.constant dense<0.000000e+00> : vector<1xf32>
    %827 = vector.multi_reduction <add>, %826, %cst_73 [1, 2] : vector<1x16x25xf32> to vector<1xf32>
    %828 = vector.shape_cast %827 : vector<1xf32> to vector<1x1x1xf32>
    %829 = vector.extract %828[0, 0, 0] : f32 from vector<1x1x1xf32>
    %830 = vector.broadcast %829 : f32 to vector<1x1xf32>
    %831 = vector.broadcast %6 : f32 to vector<1x1xf32>
    %832 = arith.addf %830, %831 : vector<1x1xf32>
    %833 = arith.mulf %824, %5 : vector<16x25xf32>
    %834 = vector.shape_cast %833 : vector<16x25xf32> to vector<1x16x25xf32>
    %cst_74 = arith.constant dense<0.000000e+00> : vector<1xf32>
    %835 = vector.multi_reduction <add>, %834, %cst_74 [1, 2] : vector<1x16x25xf32> to vector<1xf32>
    %836 = vector.shape_cast %835 : vector<1xf32> to vector<1x1x1xf32>
    %837 = vector.extract %836[0, 0, 0] : f32 from vector<1x1x1xf32>
    %838 = vector.broadcast %837 : f32 to vector<1x1xf32>
    %839 = vector.broadcast %7 : f32 to vector<1x1xf32>
    %840 = arith.addf %838, %839 : vector<1x1xf32>
    %841 = tpu.concatenate %832, %840 in 1 : vector<1x1xf32>, vector<1x1xf32> -> vector<1x2xf32>
    %c7 = arith.constant 7 : index
    %c0_75 = arith.constant 0 : index
    %c0_76 = arith.constant 0 : index
    %842 = vector.load %arg1[%c7, %c0_75, %c0_76] : memref<8x7x25xf32, #tpu.memory_space<vmem>>, vector<1x7x25xf32>
    %843 = vector.shape_cast %842 : vector<1x7x25xf32> to vector<7x25xf32>
    %c7_77 = arith.constant 7 : index
    %c0_78 = arith.constant 0 : index
    %c0_79 = arith.constant 0 : index
    %844 = vector.load %arg2[%c7_77, %c0_78, %c0_79] : memref<8x7x25xf32, #tpu.memory_space<vmem>>, vector<1x7x25xf32>
    %845 = vector.shape_cast %844 : vector<1x7x25xf32> to vector<7x25xf32>
    %846 = vector.extract_strided_slice %0 {offsets = [0, 0], sizes = [16, 1], strides = [1, 1]} : vector<16x7xf32> to vector<16x1xf32>
    %847 = vector.extract_strided_slice %843 {offsets = [0, 0], sizes = [1, 25], strides = [1, 1]} : vector<7x25xf32> to vector<1x25xf32>
    %848 = vector.broadcast %846 : vector<16x1xf32> to vector<16x25xf32>
    %849 = vector.broadcast %847 : vector<1x25xf32> to vector<16x25xf32>
    %850 = arith.mulf %848, %849 : vector<16x25xf32>
    %851 = vector.extract_strided_slice %0 {offsets = [0, 1], sizes = [16, 1], strides = [1, 1]} : vector<16x7xf32> to vector<16x1xf32>
    %852 = vector.extract_strided_slice %843 {offsets = [1, 0], sizes = [1, 25], strides = [1, 1]} : vector<7x25xf32> to vector<1x25xf32>
    %853 = vector.broadcast %851 : vector<16x1xf32> to vector<16x25xf32>
    %854 = vector.broadcast %852 : vector<1x25xf32> to vector<16x25xf32>
    %855 = arith.mulf %853, %854 : vector<16x25xf32>
    %856 = arith.addf %850, %855 : vector<16x25xf32>
    %857 = vector.extract_strided_slice %0 {offsets = [0, 2], sizes = [16, 1], strides = [1, 1]} : vector<16x7xf32> to vector<16x1xf32>
    %858 = vector.extract_strided_slice %843 {offsets = [2, 0], sizes = [1, 25], strides = [1, 1]} : vector<7x25xf32> to vector<1x25xf32>
    %859 = vector.broadcast %857 : vector<16x1xf32> to vector<16x25xf32>
    %860 = vector.broadcast %858 : vector<1x25xf32> to vector<16x25xf32>
    %861 = arith.mulf %859, %860 : vector<16x25xf32>
    %862 = arith.addf %856, %861 : vector<16x25xf32>
    %863 = vector.extract_strided_slice %0 {offsets = [0, 3], sizes = [16, 1], strides = [1, 1]} : vector<16x7xf32> to vector<16x1xf32>
    %864 = vector.extract_strided_slice %843 {offsets = [3, 0], sizes = [1, 25], strides = [1, 1]} : vector<7x25xf32> to vector<1x25xf32>
    %865 = vector.broadcast %863 : vector<16x1xf32> to vector<16x25xf32>
    %866 = vector.broadcast %864 : vector<1x25xf32> to vector<16x25xf32>
    %867 = arith.mulf %865, %866 : vector<16x25xf32>
    %868 = arith.addf %862, %867 : vector<16x25xf32>
    %869 = vector.extract_strided_slice %0 {offsets = [0, 4], sizes = [16, 1], strides = [1, 1]} : vector<16x7xf32> to vector<16x1xf32>
    %870 = vector.extract_strided_slice %843 {offsets = [4, 0], sizes = [1, 25], strides = [1, 1]} : vector<7x25xf32> to vector<1x25xf32>
    %871 = vector.broadcast %869 : vector<16x1xf32> to vector<16x25xf32>
    %872 = vector.broadcast %870 : vector<1x25xf32> to vector<16x25xf32>
    %873 = arith.mulf %871, %872 : vector<16x25xf32>
    %874 = arith.addf %868, %873 : vector<16x25xf32>
    %875 = vector.extract_strided_slice %0 {offsets = [0, 5], sizes = [16, 1], strides = [1, 1]} : vector<16x7xf32> to vector<16x1xf32>
    %876 = vector.extract_strided_slice %843 {offsets = [5, 0], sizes = [1, 25], strides = [1, 1]} : vector<7x25xf32> to vector<1x25xf32>
    %877 = vector.broadcast %875 : vector<16x1xf32> to vector<16x25xf32>
    %878 = vector.broadcast %876 : vector<1x25xf32> to vector<16x25xf32>
    %879 = arith.mulf %877, %878 : vector<16x25xf32>
    %880 = arith.addf %874, %879 : vector<16x25xf32>
    %881 = vector.extract_strided_slice %0 {offsets = [0, 6], sizes = [16, 1], strides = [1, 1]} : vector<16x7xf32> to vector<16x1xf32>
    %882 = vector.extract_strided_slice %843 {offsets = [6, 0], sizes = [1, 25], strides = [1, 1]} : vector<7x25xf32> to vector<1x25xf32>
    %883 = vector.broadcast %881 : vector<16x1xf32> to vector<16x25xf32>
    %884 = vector.broadcast %882 : vector<1x25xf32> to vector<16x25xf32>
    %885 = arith.mulf %883, %884 : vector<16x25xf32>
    %886 = arith.addf %880, %885 : vector<16x25xf32>
    %887 = vector.broadcast %1 : vector<16x1xf32> to vector<16x25xf32>
    %888 = arith.addf %886, %887 : vector<16x25xf32>
    %cst_80 = arith.constant 1.000000e+00 : f32
    %889 = vector.broadcast %cst_80 : f32 to vector<16x25xf32>
    %890 = arith.cmpf ogt, %888, %889 : vector<16x25xf32>
    %891 = arith.extui %890 : vector<16x25xi1> to vector<16x25xi32>
    %892 = arith.sitofp %891 : vector<16x25xi32> to vector<16x25xf32>
    %893 = vector.extract_strided_slice %0 {offsets = [0, 0], sizes = [16, 1], strides = [1, 1]} : vector<16x7xf32> to vector<16x1xf32>
    %894 = vector.extract_strided_slice %845 {offsets = [0, 0], sizes = [1, 25], strides = [1, 1]} : vector<7x25xf32> to vector<1x25xf32>
    %895 = vector.broadcast %893 : vector<16x1xf32> to vector<16x25xf32>
    %896 = vector.broadcast %894 : vector<1x25xf32> to vector<16x25xf32>
    %897 = arith.mulf %895, %896 : vector<16x25xf32>
    %898 = vector.extract_strided_slice %0 {offsets = [0, 1], sizes = [16, 1], strides = [1, 1]} : vector<16x7xf32> to vector<16x1xf32>
    %899 = vector.extract_strided_slice %845 {offsets = [1, 0], sizes = [1, 25], strides = [1, 1]} : vector<7x25xf32> to vector<1x25xf32>
    %900 = vector.broadcast %898 : vector<16x1xf32> to vector<16x25xf32>
    %901 = vector.broadcast %899 : vector<1x25xf32> to vector<16x25xf32>
    %902 = arith.mulf %900, %901 : vector<16x25xf32>
    %903 = arith.addf %897, %902 : vector<16x25xf32>
    %904 = vector.extract_strided_slice %0 {offsets = [0, 2], sizes = [16, 1], strides = [1, 1]} : vector<16x7xf32> to vector<16x1xf32>
    %905 = vector.extract_strided_slice %845 {offsets = [2, 0], sizes = [1, 25], strides = [1, 1]} : vector<7x25xf32> to vector<1x25xf32>
    %906 = vector.broadcast %904 : vector<16x1xf32> to vector<16x25xf32>
    %907 = vector.broadcast %905 : vector<1x25xf32> to vector<16x25xf32>
    %908 = arith.mulf %906, %907 : vector<16x25xf32>
    %909 = arith.addf %903, %908 : vector<16x25xf32>
    %910 = vector.extract_strided_slice %0 {offsets = [0, 3], sizes = [16, 1], strides = [1, 1]} : vector<16x7xf32> to vector<16x1xf32>
    %911 = vector.extract_strided_slice %845 {offsets = [3, 0], sizes = [1, 25], strides = [1, 1]} : vector<7x25xf32> to vector<1x25xf32>
    %912 = vector.broadcast %910 : vector<16x1xf32> to vector<16x25xf32>
    %913 = vector.broadcast %911 : vector<1x25xf32> to vector<16x25xf32>
    %914 = arith.mulf %912, %913 : vector<16x25xf32>
    %915 = arith.addf %909, %914 : vector<16x25xf32>
    %916 = vector.extract_strided_slice %0 {offsets = [0, 4], sizes = [16, 1], strides = [1, 1]} : vector<16x7xf32> to vector<16x1xf32>
    %917 = vector.extract_strided_slice %845 {offsets = [4, 0], sizes = [1, 25], strides = [1, 1]} : vector<7x25xf32> to vector<1x25xf32>
    %918 = vector.broadcast %916 : vector<16x1xf32> to vector<16x25xf32>
    %919 = vector.broadcast %917 : vector<1x25xf32> to vector<16x25xf32>
    %920 = arith.mulf %918, %919 : vector<16x25xf32>
    %921 = arith.addf %915, %920 : vector<16x25xf32>
    %922 = vector.extract_strided_slice %0 {offsets = [0, 5], sizes = [16, 1], strides = [1, 1]} : vector<16x7xf32> to vector<16x1xf32>
    %923 = vector.extract_strided_slice %845 {offsets = [5, 0], sizes = [1, 25], strides = [1, 1]} : vector<7x25xf32> to vector<1x25xf32>
    %924 = vector.broadcast %922 : vector<16x1xf32> to vector<16x25xf32>
    %925 = vector.broadcast %923 : vector<1x25xf32> to vector<16x25xf32>
    %926 = arith.mulf %924, %925 : vector<16x25xf32>
    %927 = arith.addf %921, %926 : vector<16x25xf32>
    %928 = vector.extract_strided_slice %0 {offsets = [0, 6], sizes = [16, 1], strides = [1, 1]} : vector<16x7xf32> to vector<16x1xf32>
    %929 = vector.extract_strided_slice %845 {offsets = [6, 0], sizes = [1, 25], strides = [1, 1]} : vector<7x25xf32> to vector<1x25xf32>
    %930 = vector.broadcast %928 : vector<16x1xf32> to vector<16x25xf32>
    %931 = vector.broadcast %929 : vector<1x25xf32> to vector<16x25xf32>
    %932 = arith.mulf %930, %931 : vector<16x25xf32>
    %933 = arith.addf %927, %932 : vector<16x25xf32>
    %934 = vector.broadcast %1 : vector<16x1xf32> to vector<16x25xf32>
    %935 = arith.addf %933, %934 : vector<16x25xf32>
    %cst_81 = arith.constant 1.000000e+00 : f32
    %936 = vector.broadcast %cst_81 : f32 to vector<16x25xf32>
    %937 = arith.cmpf ogt, %935, %936 : vector<16x25xf32>
    %938 = arith.extui %937 : vector<16x25xi1> to vector<16x25xi32>
    %939 = arith.sitofp %938 : vector<16x25xi32> to vector<16x25xf32>
    %940 = vector.extract_strided_slice %939 {offsets = [0, 0], sizes = [16, 24], strides = [1, 1]} : vector<16x25xf32> to vector<16x24xf32>
    %941 = tpu.concatenate %8, %940 in 1 : vector<16x1xf32>, vector<16x24xf32> -> vector<16x25xf32>
    %942 = arith.maximumf %892, %939 : vector<16x25xf32>
    %943 = arith.maximumf %942, %941 : vector<16x25xf32>
    %944 = arith.mulf %943, %3 : vector<16x25xf32>
    %945 = vector.shape_cast %944 : vector<16x25xf32> to vector<1x16x25xf32>
    %cst_82 = arith.constant dense<0.000000e+00> : vector<1xf32>
    %946 = vector.multi_reduction <add>, %945, %cst_82 [1, 2] : vector<1x16x25xf32> to vector<1xf32>
    %947 = vector.shape_cast %946 : vector<1xf32> to vector<1x1x1xf32>
    %948 = vector.extract %947[0, 0, 0] : f32 from vector<1x1x1xf32>
    %949 = vector.broadcast %948 : f32 to vector<1x1xf32>
    %950 = vector.broadcast %6 : f32 to vector<1x1xf32>
    %951 = arith.addf %949, %950 : vector<1x1xf32>
    %952 = arith.mulf %943, %5 : vector<16x25xf32>
    %953 = vector.shape_cast %952 : vector<16x25xf32> to vector<1x16x25xf32>
    %cst_83 = arith.constant dense<0.000000e+00> : vector<1xf32>
    %954 = vector.multi_reduction <add>, %953, %cst_83 [1, 2] : vector<1x16x25xf32> to vector<1xf32>
    %955 = vector.shape_cast %954 : vector<1xf32> to vector<1x1x1xf32>
    %956 = vector.extract %955[0, 0, 0] : f32 from vector<1x1x1xf32>
    %957 = vector.broadcast %956 : f32 to vector<1x1xf32>
    %958 = vector.broadcast %7 : f32 to vector<1x1xf32>
    %959 = arith.addf %957, %958 : vector<1x1xf32>
    %960 = tpu.concatenate %951, %959 in 1 : vector<1x1xf32>, vector<1x1xf32> -> vector<1x2xf32>
    %961 = tpu.concatenate %127, %246, %365, %484, %603, %722, %841, %960 in 0 : vector<1x2xf32>, vector<1x2xf32>, vector<1x2xf32>, vector<1x2xf32>, vector<1x2xf32>, vector<1x2xf32>, vector<1x2xf32>, vector<1x2xf32> -> vector<8x2xf32>
    %c0_84 = arith.constant 0 : index
    %c0_85 = arith.constant 0 : index
    %962 = vector.load %arg8[%c0_84, %c0_85] : memref<8x2xf32, #tpu.memory_space<vmem>>, vector<8x2xf32>
    tpu.vector_store %arg8[%c0_84, %c0_85], %961 {strides = array<i32>} : memref<8x2xf32, #tpu.memory_space<vmem>>, vector<8x2xf32>,
    %cst_86 = arith.constant 1.000000e+00 : f32
    %963 = vector.broadcast %cst_86 : f32 to vector<8x2xf32>
    %964 = arith.cmpf ogt, %961, %963 : vector<8x2xf32>
    %965 = arith.extui %964 : vector<8x2xi1> to vector<8x2xi32>
    %966 = arith.sitofp %965 : vector<8x2xi32> to vector<8x2xf32>
    %c0_87 = arith.constant 0 : index
    %c0_88 = arith.constant 0 : index
    %967 = vector.load %arg7[%c0_87, %c0_88] : memref<8x2xf32, #tpu.memory_space<vmem>>, vector<8x2xf32>
    tpu.vector_store %arg7[%c0_87, %c0_88], %966 {strides = array<i32>} : memref<8x2xf32, #tpu.memory_space<vmem>>, vector<8x2xf32>,
    return
  }
  func.func @transform_0(%arg0: i32) -> (i32, i32, i32) {
    %c0_i32 = arith.constant 0 : i32
    %c0_i32_0 = arith.constant 0 : i32
    %c0_i32_1 = arith.constant 0 : i32
    return %arg0, %c0_i32, %c0_i32_0 : i32, i32, i32
  }
  func.func @transform_1(%arg0: i32) -> (i32, i32, i32) {
    %c0_i32 = arith.constant 0 : i32
    %c0_i32_0 = arith.constant 0 : i32
    %c0_i32_1 = arith.constant 0 : i32
    return %arg0, %c0_i32, %c0_i32_0 : i32, i32, i32
  }
  func.func @transform_2(%arg0: i32) -> (i32, i32) {
    %c0_i32 = arith.constant 0 : i32
    %c0_i32_0 = arith.constant 0 : i32
    %c0_i32_1 = arith.constant 0 : i32
    return %c0_i32, %c0_i32_0 : i32, i32
  }
  func.func @transform_3(%arg0: i32) -> (i32, i32) {
    %c0_i32 = arith.constant 0 : i32
    %c0_i32_0 = arith.constant 0 : i32
    %c0_i32_1 = arith.constant 0 : i32
    return %c0_i32, %c0_i32_0 : i32, i32
  }
  func.func @transform_4(%arg0: i32) -> (i32, i32, i32) {
    %c0_i32 = arith.constant 0 : i32
    %c0_i32_0 = arith.constant 0 : i32
    %c0_i32_1 = arith.constant 0 : i32
    %c0_i32_2 = arith.constant 0 : i32
    return %c0_i32, %c0_i32_0, %c0_i32_1 : i32, i32, i32
  }
  func.func @transform_5(%arg0: i32) -> i32 {
    %c0_i32 = arith.constant 0 : i32
    %c0_i32_0 = arith.constant 0 : i32
    return %c0_i32 : i32
  }
  func.func @transform_6(%arg0: i32) -> (i32, i32) {
    %c0_i32 = arith.constant 0 : i32
    %c0_i32_0 = arith.constant 0 : i32
    return %arg0, %c0_i32 : i32, i32
  }
  func.func @transform_7(%arg0: i32) -> (i32, i32) {
    %c0_i32 = arith.constant 0 : i32
    %c0_i32_0 = arith.constant 0 : i32
    return %arg0, %c0_i32 : i32, i32
  }
}

</mosaic_0001>

<llo_original>
// kernel: spiking_densenet_forward.1
$region0: #{spiking_densenet_forward.1}
  #allocation0 [shape = 'u32[]', space=smem, size = 0x4, offset = 0x4, fixed_abs, tag = 'smem constant byte address 0x4 - core index']
  #allocation1 [shape = 'u32[72,128]{1,0:T(1,128)}', space=vmem, size = 0x9000, scoped, tag = 'internal scratch']
  %s0 = inlined_call_operand.vmem [shape: f32[8,7,25], index: 0, kind: input, shape index: {}]
  %s1 = inlined_call_operand.vmem [shape: f32[8,7,25], index: 1, kind: input, shape index: {}]
  %s2 = inlined_call_operand.vmem [shape: f32[16,7], index: 2, kind: input, shape index: {}]
  %s3 = inlined_call_operand.vmem [shape: f32[16,1], index: 3, kind: input, shape index: {}]
  %s4 = inlined_call_operand.vmem [shape: f32[2,16,25], index: 4, kind: input, shape index: {}]
  %s5 = inlined_call_operand.vmem [shape: f32[2], index: 5, kind: input, shape index: {}]
  %s6 = inlined_call_operand.vmem [shape: f32[8,2], index: 6, kind: output, shape index: {0}]
  %s7 = inlined_call_operand.vmem [shape: f32[8,2], index: 7, kind: output, shape index: {1}]
  %8 = xla_tuple %s6, %s7
  %s9 = sld [smem:[#allocation0]]
  $region46: #{spiking_densenet_forward.1} parent=0
    _
  %s11 = ssub.s32 1, %s9
  %s12 = scalar_select 0, %s11, %s9
  $region1: #{spiking_densenet_forward.1} parent=0
    #allocation2 [shape = 'u8[512]{0}', space=smem, size = 0x200, scoped, tag = 'input window, operand 5, single buffered']
    #allocation3 [shape = 's32[1]{0}', space=sflag, size = 0x4, scoped, tag = 'scoped memory for spiking_densenet_forward.1']
    %13 = vsyncpa [#allocation3], 0
    // Predicated region
    $region2: #{spiking_densenet_forward.1} parent=1 // pred_check
      _
    $region3: #{spiking_densenet_forward.1} parent=1 // pred_check_branch
      %15 = sbr.rel (0) target = $region5
    $region4: #{spiking_densenet_forward.1} parent=1 // pred_region
      _
    $region5: #{spiking_densenet_forward.1} parent=1 // pred_fallthru
      _
    // Predicated region
    $region6: #{spiking_densenet_forward.1} parent=1 // pred_check
      _
    $region7: #{spiking_densenet_forward.1} parent=1 // pred_check_branch
      %17 = sbr.rel (0) target = $region9
    $region8: #{spiking_densenet_forward.1} parent=1 // pred_region
      _
    $region9: #{spiking_densenet_forward.1} parent=1 // pred_fallthru
      _
    // Predicated region
    $region10: #{spiking_densenet_forward.1} parent=1 // pred_check
      _
    $region11: #{spiking_densenet_forward.1} parent=1 // pred_check_branch
      %19 = sbr.rel (0) target = $region13
    $region12: #{spiking_densenet_forward.1} parent=1 // pred_region
      _
    $region13: #{spiking_densenet_forward.1} parent=1 // pred_fallthru
      _
    // Predicated region
    $region14: #{spiking_densenet_forward.1} parent=1 // pred_check
      _
    $region15: #{spiking_densenet_forward.1} parent=1 // pred_check_branch
      %21 = sbr.rel (0) target = $region17
    $region16: #{spiking_densenet_forward.1} parent=1 // pred_region
      _
    $region17: #{spiking_densenet_forward.1} parent=1 // pred_fallthru
      _
    // Predicated region
    $region18: #{spiking_densenet_forward.1} parent=1 // pred_check
      _
    $region19: #{spiking_densenet_forward.1} parent=1 // pred_check_branch
      %23 = sbr.rel (0) target = $region21
    $region20: #{spiking_densenet_forward.1} parent=1 // pred_region
      _
    $region21: #{spiking_densenet_forward.1} parent=1 // pred_fallthru
      _
    // Predicated region
    $region22: #{spiking_densenet_forward.1} parent=1 // pred_check
      _
    $region23: #{spiking_densenet_forward.1} parent=1 // pred_check_branch
      %25 = sbr.rel (0) target = $region25
    $region24: #{spiking_densenet_forward.1} parent=1 // pred_region
      %27 = vsyncadd [#allocation3], 0
      %s29 = sshll.u32 %s5, 4
      %s30 = int_to_ptr.vmem [resolvable:$true] %s29
      %32 = dma.vmem_to_smem %s30, 16, [#allocation2], [#allocation3]
    $region25: #{spiking_densenet_forward.1} parent=1 // pred_fallthru
      _
    // Predicated region
    $region26: #{spiking_densenet_forward.1} parent=1 // pred_check
      _
    $region27: #{spiking_densenet_forward.1} parent=1 // pred_check_branch
      %34 = sbr.rel (0) target = $region29
    $region28: #{spiking_densenet_forward.1} parent=1 // pred_region
      %36 = dma.done [#allocation3], 16
    $region29: #{spiking_densenet_forward.1} parent=1 // pred_fallthru
      _
    %37 = sfence
    %v38 = vld [vmem:[%s2] sm:$0xff]
    %v39 = vld [vmem:[%s2 + $0x8] sm:$0xff]
    %v40 = vld [vmem:[%s3] sm:$0xff]
    %v41 = vld [vmem:[%s3 + $0x8] sm:$0xff]
    %v42 = vld [vmem:[%s4] sm:$0xff]
    %v43 = vld [vmem:[%s4 + $0x8] sm:$0xff]
    %s44 = scalar_lea.vmem %s4, 16
    %v45 = vld [vmem:[%s44] sm:$0xff]
    %v46 = vld [vmem:[%s44 + $0x8] sm:$0xff]
    %s47 = sld [smem:[#allocation2]]
    %s48 = sld [smem:[#allocation2 + $0x1]]
    %v49 = vld [vmem:[%s0] sm:$0x7f]
    %v50 = vld [vmem:[%s1] sm:$0x7f]
    %52 = vset.pattern.permute.xlu0 0
    %53 = vperm.xlu0 %52, %v38
    %v54 = vpop.permute.xlu0 %53
    %57 = vset.pattern.permute.xlu0 0
    %58 = vperm.xlu0 %57, %v39
    %v59 = vpop.permute.xlu0 %58
    %v61 = vperm.slane %v49, 0
    %v62 = vmul.f32 %v54, %v61
    %v63 = vmul.f32 %v59, %v61
    %64 = vset.pattern.permute.xlu0 1
    %65 = vperm.xlu0 %64, %v38
    %v66 = vpop.permute.xlu0 %65
    %68 = vset.pattern.permute.xlu0 1
    %69 = vperm.xlu0 %68, %v39
    %v70 = vpop.permute.xlu0 %69
    %v72 = vperm.slane %v49, 1
    %v73 = vmul.f32 %v66, %v72
    %v74 = vmul.f32 %v70, %v72
    %v75 = vadd.f32 %v62, %v73
    %v76 = vadd.f32 %v63, %v74
    %77 = vset.pattern.permute.xlu0 2
    %78 = vperm.xlu0 %77, %v38
    %v79 = vpop.permute.xlu0 %78
    %81 = vset.pattern.permute.xlu0 2
    %82 = vperm.xlu0 %81, %v39
    %v83 = vpop.permute.xlu0 %82
    %v85 = vperm.slane %v49, 2
    %v86 = vmul.f32 %v79, %v85
    %v87 = vmul.f32 %v83, %v85
    %v88 = vadd.f32 %v75, %v86
    %v89 = vadd.f32 %v76, %v87
    %90 = vset.pattern.permute.xlu0 3
    %91 = vperm.xlu0 %90, %v38
    %v92 = vpop.permute.xlu0 %91
    %94 = vset.pattern.permute.xlu0 3
    %95 = vperm.xlu0 %94, %v39
    %v96 = vpop.permute.xlu0 %95
    %v98 = vperm.slane %v49, 3
    %v99 = vmul.f32 %v92, %v98
    %v100 = vmul.f32 %v96, %v98
    %v101 = vadd.f32 %v88, %v99
    %v102 = vadd.f32 %v89, %v100
    %103 = vset.pattern.permute.xlu0 4
    %104 = vperm.xlu0 %103, %v38
    %v105 = vpop.permute.xlu0 %104
    %107 = vset.pattern.permute.xlu0 4
    %108 = vperm.xlu0 %107, %v39
    %v109 = vpop.permute.xlu0 %108
    %v111 = vperm.slane %v49, 4
    %v112 = vmul.f32 %v105, %v111
    %v113 = vmul.f32 %v109, %v111
    %v114 = vadd.f32 %v101, %v112
    %v115 = vadd.f32 %v102, %v113
    %116 = vset.pattern.permute.xlu0 5
    %117 = vperm.xlu0 %116, %v38
    %v118 = vpop.permute.xlu0 %117
    %120 = vset.pattern.permute.xlu0 5
    %121 = vperm.xlu0 %120, %v39
    %v122 = vpop.permute.xlu0 %121
    %v124 = vperm.slane %v49, 5
    %v125 = vmul.f32 %v118, %v124
    %v126 = vmul.f32 %v122, %v124
    %v127 = vadd.f32 %v114, %v125
    %v128 = vadd.f32 %v115, %v126
    %129 = vset.pattern.permute.xlu0 6
    %130 = vperm.xlu0 %129, %v38
    %v131 = vpop.permute.xlu0 %130
    %133 = vset.pattern.permute.xlu0 6
    %134 = vperm.xlu0 %133, %v39
    %v135 = vpop.permute.xlu0 %134
    %v137 = vperm.slane %v49, 6
    %v138 = vmul.f32 %v131, %v137
    %v139 = vmul.f32 %v135, %v137
    %v140 = vadd.f32 %v127, %v138
    %v141 = vadd.f32 %v128, %v139
    %143 = vset.pattern.permute.xlu0 0
    %144 = vperm.xlu0 %143, %v40
    %v145 = vpop.permute.xlu0 %144
    %148 = vset.pattern.permute.xlu0 0
    %149 = vperm.xlu0 %148, %v41
    %v150 = vpop.permute.xlu0 %149
    %v152 = vadd.f32 %v140, %v145
    %v153 = vadd.f32 %v141, %v150
    %vm154 = vcmp.gt.f32.partialorder %v152, 1.0
    %vm155 = vcmp.gt.f32.partialorder %v153, 1.0
    %v156 = vsel %vm154, 1, 0
    %v157 = vsel %vm155, 1, 0
    %v158 = vcvt.s32.f32 %v156
    %v159 = vcvt.s32.f32 %v157
    %v160 = vperm.slane %v50, 0
    %v161 = vmul.f32 %v54, %v160
    %v162 = vmul.f32 %v59, %v160
    %v163 = vperm.slane %v50, 1
    %v164 = vmul.f32 %v66, %v163
    %v165 = vmul.f32 %v70, %v163
    %v166 = vadd.f32 %v161, %v164
    %v167 = vadd.f32 %v162, %v165
    %v168 = vperm.slane %v50, 2
    %v169 = vmul.f32 %v79, %v168
    %v170 = vmul.f32 %v83, %v168
    %v171 = vadd.f32 %v166, %v169
    %v172 = vadd.f32 %v167, %v170
    %v173 = vperm.slane %v50, 3
    %v174 = vmul.f32 %v92, %v173
    %v175 = vmul.f32 %v96, %v173
    %v176 = vadd.f32 %v171, %v174
    %v177 = vadd.f32 %v172, %v175
    %v178 = vperm.slane %v50, 4
    %v179 = vmul.f32 %v105, %v178
    %v180 = vmul.f32 %v109, %v178
    %v181 = vadd.f32 %v176, %v179
    %v182 = vadd.f32 %v177, %v180
    %v183 = vperm.slane %v50, 5
    %v184 = vmul.f32 %v118, %v183
    %v185 = vmul.f32 %v122, %v183
    %v186 = vadd.f32 %v181, %v184
    %v187 = vadd.f32 %v182, %v185
    %v188 = vperm.slane %v50, 6
    %v189 = vmul.f32 %v131, %v188
    %v190 = vmul.f32 %v135, %v188
    %v191 = vadd.f32 %v186, %v189
    %v192 = vadd.f32 %v187, %v190
    %v193 = vadd.f32 %v191, %v145
    %v194 = vadd.f32 %v192, %v150
    %vm195 = vcmp.gt.f32.partialorder %v193, 1.0
    %vm196 = vcmp.gt.f32.partialorder %v194, 1.0
    %v197 = vsel %vm195, 1, 0
    %v198 = vsel %vm196, 1, 0
    %v199 = vcvt.s32.f32 %v197
    %v200 = vcvt.s32.f32 %v198
    %203 = vrot.lane.b32.xlu0 %v199, 1
    %v204 = vpop.permute.xlu0 %203
    %205 = vrot.lane.b32.xlu0 %v200, 1
    %v206 = vpop.permute.xlu0 %205
    %vm209 = vcmask 7168
    %v210 = vsel %vm209, 0.0, %v204
    %v211 = vsel %vm209, 0.0, %v206
    %v212 = vmax.f32 %v158, %v199
    %v213 = vmax.f32 %v159, %v200
    %v214 = vmax.f32 %v212, %v210
    %v215 = vmax.f32 %v213, %v211
    %v216 = vmul.f32 %v214, %v42
    %v217 = vmul.f32 %v215, %v43
    %vm218 = vcmask 203776
    %v219 = vsel %vm218, %v216, 0.0
    %v220 = vsel %vm218, %v217, 0.0
    %v221 = vadd.f32 %v219, %v220
    %222 = vadd.xlane.f32.xlu0 %v221
    %v223 = vpop.xlane.xlu0 %222
    %v224 = vrot.slane %v223, 4
    %v225 = vadd.f32 %v223, %v224
    %v226 = vrot.slane %v225, 2
    %v227 = vadd.f32 %v225, %v226
    %v228 = vrot.slane %v227, 1
    %v229 = vadd.f32 %v227, %v228
    %s230 = vtos %v229
    %v231 = vstv %s230
    %v232 = vstv %s47
    %v233 = vadd.f32 %v231, %v232
    %v234 = vmul.f32 %v214, %v45
    %v235 = vmul.f32 %v215, %v46
    %v236 = vsel %vm218, %v234, 0.0
    %v237 = vsel %vm218, %v235, 0.0
    %v238 = vadd.f32 %v236, %v237
    %239 = vadd.xlane.f32.xlu0 %v238
    %v240 = vpop.xlane.xlu0 %239
    %v241 = vrot.slane %v240, 4
    %v242 = vadd.f32 %v240, %v241
    %v243 = vrot.slane %v242, 2
    %v244 = vadd.f32 %v242, %v243
    %v245 = vrot.slane %v244, 1
    %v246 = vadd.f32 %v244, %v245
    %s247 = vtos %v246
    %v248 = vstv %s247
    %v249 = vstv %s48
    %v250 = vadd.f32 %v248, %v249
    %v251 = vsel %vm209, %v233, %v250
    %s252 = scalar_lea.vmem %s0, 8
    %v253 = vld [vmem:[%s252] sm:$0x7f]
    %s254 = scalar_lea.vmem %s1, 8
    %v255 = vld [vmem:[%s254] sm:$0x7f]
    %v256 = vperm.slane %v253, 0
    %v257 = vmul.f32 %v54, %v256
    %v258 = vmul.f32 %v59, %v256
    %v259 = vperm.slane %v253, 1
    %v260 = vmul.f32 %v66, %v259
    %v261 = vmul.f32 %v70, %v259
    %v262 = vadd.f32 %v257, %v260
    %v263 = vadd.f32 %v258, %v261
    %v264 = vperm.slane %v253, 2
    %v265 = vmul.f32 %v79, %v264
    %v266 = vmul.f32 %v83, %v264
    %v267 = vadd.f32 %v262, %v265
    %v268 = vadd.f32 %v263, %v266
    %v269 = vperm.slane %v253, 3
    %v270 = vmul.f32 %v92, %v269
    %v271 = vmul.f32 %v96, %v269
    %v272 = vadd.f32 %v267, %v270
    %v273 = vadd.f32 %v268, %v271
    %v274 = vperm.slane %v253, 4
    %v275 = vmul.f32 %v105, %v274
    %v276 = vmul.f32 %v109, %v274
    %v277 = vadd.f32 %v272, %v275
    %v278 = vadd.f32 %v273, %v276
    %v279 = vperm.slane %v253, 5
    %v280 = vmul.f32 %v118, %v279
    %v281 = vmul.f32 %v122, %v279
    %v282 = vadd.f32 %v277, %v280
    %v283 = vadd.f32 %v278, %v281
    %v284 = vperm.slane %v253, 6
    %v285 = vmul.f32 %v131, %v284
    %v286 = vmul.f32 %v135, %v284
    %v287 = vadd.f32 %v282, %v285
    %v288 = vadd.f32 %v283, %v286
    %v289 = vadd.f32 %v287, %v145
    %v290 = vadd.f32 %v288, %v150
    %vm291 = vcmp.gt.f32.partialorder %v289, 1.0
    %vm292 = vcmp.gt.f32.partialorder %v290, 1.0
    %v293 = vsel %vm291, 1, 0
    %v294 = vsel %vm292, 1, 0
    %v295 = vcvt.s32.f32 %v293
    %v296 = vcvt.s32.f32 %v294
    %v297 = vperm.slane %v255, 0
    %v298 = vmul.f32 %v54, %v297
    %v299 = vmul.f32 %v59, %v297
    %v300 = vperm.slane %v255, 1
    %v301 = vmul.f32 %v66, %v300
    %v302 = vmul.f32 %v70, %v300
    %v303 = vadd.f32 %v298, %v301
    %v304 = vadd.f32 %v299, %v302
    %v305 = vperm.slane %v255, 2
    %v306 = vmul.f32 %v79, %v305
    %v307 = vmul.f32 %v83, %v305
    %v308 = vadd.f32 %v303, %v306
    %v309 = vadd.f32 %v304, %v307
    %v310 = vperm.slane %v255, 3
    %v311 = vmul.f32 %v92, %v310
    %v312 = vmul.f32 %v96, %v310
    %v313 = vadd.f32 %v308, %v311
    %v314 = vadd.f32 %v309, %v312
    %v315 = vperm.slane %v255, 4
    %v316 = vmul.f32 %v105, %v315
    %v317 = vmul.f32 %v109, %v315
    %v318 = vadd.f32 %v313, %v316
    %v319 = vadd.f32 %v314, %v317
    %v320 = vperm.slane %v255, 5
    %v321 = vmul.f32 %v118, %v320
    %v322 = vmul.f32 %v122, %v320
    %v323 = vadd.f32 %v318, %v321
    %v324 = vadd.f32 %v319, %v322
    %v325 = vperm.slane %v255, 6
    %v326 = vmul.f32 %v131, %v325
    %v327 = vmul.f32 %v135, %v325
    %v328 = vadd.f32 %v323, %v326
    %v329 = vadd.f32 %v324, %v327
    %v330 = vadd.f32 %v328, %v145
    %v331 = vadd.f32 %v329, %v150
    %vm332 = vcmp.gt.f32.partialorder %v330, 1.0
    %vm333 = vcmp.gt.f32.partialorder %v331, 1.0
    %v334 = vsel %vm332, 1, 0
    %v335 = vsel %vm333, 1, 0
    %v336 = vcvt.s32.f32 %v334
    %v337 = vcvt.s32.f32 %v335
    %340 = vrot.lane.b32.xlu0 %v336, 1
    %v341 = vpop.permute.xlu0 %340
    %342 = vrot.lane.b32.xlu0 %v337, 1
    %v343 = vpop.permute.xlu0 %342
    %v346 = vsel %vm209, 0.0, %v341
    %v347 = vsel %vm209, 0.0, %v343
    %v348 = vmax.f32 %v295, %v336
    %v349 = vmax.f32 %v296, %v337
    %v350 = vmax.f32 %v348, %v346
    %v351 = vmax.f32 %v349, %v347
    %v352 = vmul.f32 %v350, %v42
    %v353 = vmul.f32 %v351, %v43
    %v354 = vsel %vm218, %v352, 0.0
    %v355 = vsel %vm218, %v353, 0.0
    %v356 = vadd.f32 %v354, %v355
    %357 = vadd.xlane.f32.xlu0 %v356
    %v358 = vpop.xlane.xlu0 %357
    %v359 = vrot.slane %v358, 4
    %v360 = vadd.f32 %v358, %v359
    %v361 = vrot.slane %v360, 2
    %v362 = vadd.f32 %v360, %v361
    %v363 = vrot.slane %v362, 1
    %v364 = vadd.f32 %v362, %v363
    %s365 = vtos %v364
    %v366 = vstv %s365
    %v367 = vadd.f32 %v366, %v232
    %v368 = vmul.f32 %v350, %v45
    %v369 = vmul.f32 %v351, %v46
    %v370 = vsel %vm218, %v368, 0.0
    %v371 = vsel %vm218, %v369, 0.0
    %v372 = vadd.f32 %v370, %v371
    %373 = vadd.xlane.f32.xlu0 %v372
    %v374 = vpop.xlane.xlu0 %373
    %v375 = vrot.slane %v374, 4
    %v376 = vadd.f32 %v374, %v375
    %v377 = vrot.slane %v376, 2
    %v378 = vadd.f32 %v376, %v377
    %v379 = vrot.slane %v378, 1
    %v380 = vadd.f32 %v378, %v379
    %s381 = vtos %v380
    %v382 = vstv %s381
    %v383 = vadd.f32 %v382, %v249
    %v384 = vsel %vm209, %v367, %v383
    %s385 = scalar_lea.vmem %s0, 16
    %v386 = vld [vmem:[%s385] sm:$0x7f]
    %s387 = scalar_lea.vmem %s1, 16
    %v388 = vld [vmem:[%s387] sm:$0x7f]
    %v389 = vperm.slane %v386, 0
    %v390 = vmul.f32 %v54, %v389
    %v391 = vmul.f32 %v59, %v389
    %v392 = vperm.slane %v386, 1
    %v393 = vmul.f32 %v66, %v392
    %v394 = vmul.f32 %v70, %v392
    %v395 = vadd.f32 %v390, %v393
    %v396 = vadd.f32 %v391, %v394
    %v397 = vperm.slane %v386, 2
    %v398 = vmul.f32 %v79, %v397
    %v399 = vmul.f32 %v83, %v397
    %v400 = vadd.f32 %v395, %v398
    %v401 = vadd.f32 %v396, %v399
    %v402 = vperm.slane %v386, 3
    %v403 = vmul.f32 %v92, %v402
    %v404 = vmul.f32 %v96, %v402
    %v405 = vadd.f32 %v400, %v403
    %v406 = vadd.f32 %v401, %v404
    %v407 = vperm.slane %v386, 4
    %v408 = vmul.f32 %v105, %v407
    %v409 = vmul.f32 %v109, %v407
    %v410 = vadd.f32 %v405, %v408
    %v411 = vadd.f32 %v406, %v409
    %v412 = vperm.slane %v386, 5
    %v413 = vmul.f32 %v118, %v412
    %v414 = vmul.f32 %v122, %v412
    %v415 = vadd.f32 %v410, %v413
    %v416 = vadd.f32 %v411, %v414
    %v417 = vperm.slane %v386, 6
    %v418 = vmul.f32 %v131, %v417
    %v419 = vmul.f32 %v135, %v417
    %v420 = vadd.f32 %v415, %v418
    %v421 = vadd.f32 %v416, %v419
    %v422 = vadd.f32 %v420, %v145
    %v423 = vadd.f32 %v421, %v150
    %vm424 = vcmp.gt.f32.partialorder %v422, 1.0
    %vm425 = vcmp.gt.f32.partialorder %v423, 1.0
    %v426 = vsel %vm424, 1, 0
    %v427 = vsel %vm425, 1, 0
    %v428 = vcvt.s32.f32 %v426
    %v429 = vcvt.s32.f32 %v427
    %v430 = vperm.slane %v388, 0
    %v431 = vmul.f32 %v54, %v430
    %v432 = vmul.f32 %v59, %v430
    %v433 = vperm.slane %v388, 1
    %v434 = vmul.f32 %v66, %v433
    %v435 = vmul.f32 %v70, %v433
    %v436 = vadd.f32 %v431, %v434
    %v437 = vadd.f32 %v432, %v435
    %v438 = vperm.slane %v388, 2
    %v439 = vmul.f32 %v79, %v438
    %v440 = vmul.f32 %v83, %v438
    %v441 = vadd.f32 %v436, %v439
    %v442 = vadd.f32 %v437, %v440
    %v443 = vperm.slane %v388, 3
    %v444 = vmul.f32 %v92, %v443
    %v445 = vmul.f32 %v96, %v443
    %v446 = vadd.f32 %v441, %v444
    %v447 = vadd.f32 %v442, %v445
    %v448 = vperm.slane %v388, 4
    %v449 = vmul.f32 %v105, %v448
    %v450 = vmul.f32 %v109, %v448
    %v451 = vadd.f32 %v446, %v449
    %v452 = vadd.f32 %v447, %v450
    %v453 = vperm.slane %v388, 5
    %v454 = vmul.f32 %v118, %v453
    %v455 = vmul.f32 %v122, %v453
    %v456 = vadd.f32 %v451, %v454
    %v457 = vadd.f32 %v452, %v455
    %v458 = vperm.slane %v388, 6
    %v459 = vmul.f32 %v131, %v458
    %v460 = vmul.f32 %v135, %v458
    %v461 = vadd.f32 %v456, %v459
    %v462 = vadd.f32 %v457, %v460
    %v463 = vadd.f32 %v461, %v145
    %v464 = vadd.f32 %v462, %v150
    %vm465 = vcmp.gt.f32.partialorder %v463, 1.0
    %vm466 = vcmp.gt.f32.partialorder %v464, 1.0
    %v467 = vsel %vm465, 1, 0
    %v468 = vsel %vm466, 1, 0
    %v469 = vcvt.s32.f32 %v467
    %v470 = vcvt.s32.f32 %v468
    %473 = vrot.lane.b32.xlu0 %v469, 1
    %v474 = vpop.permute.xlu0 %473
    %475 = vrot.lane.b32.xlu0 %v470, 1
    %v476 = vpop.permute.xlu0 %475
    %v479 = vsel %vm209, 0.0, %v474
    %v480 = vsel %vm209, 0.0, %v476
    %v481 = vmax.f32 %v428, %v469
    %v482 = vmax.f32 %v429, %v470
    %v483 = vmax.f32 %v481, %v479
    %v484 = vmax.f32 %v482, %v480
    %v485 = vmul.f32 %v483, %v42
    %v486 = vmul.f32 %v484, %v43
    %v487 = vsel %vm218, %v485, 0.0
    %v488 = vsel %vm218, %v486, 0.0
    %v489 = vadd.f32 %v487, %v488
    %490 = vadd.xlane.f32.xlu0 %v489
    %v491 = vpop.xlane.xlu0 %490
    %v492 = vrot.slane %v491, 4
    %v493 = vadd.f32 %v491, %v492
    %v494 = vrot.slane %v493, 2
    %v495 = vadd.f32 %v493, %v494
    %v496 = vrot.slane %v495, 1
    %v497 = vadd.f32 %v495, %v496
    %s498 = vtos %v497
    %v499 = vstv %s498
    %v500 = vadd.f32 %v499, %v232
    %v501 = vmul.f32 %v483, %v45
    %v502 = vmul.f32 %v484, %v46
    %v503 = vsel %vm218, %v501, 0.0
    %v504 = vsel %vm218, %v502, 0.0
    %v505 = vadd.f32 %v503, %v504
    %506 = vadd.xlane.f32.xlu0 %v505
    %v507 = vpop.xlane.xlu0 %506
    %v508 = vrot.slane %v507, 4
    %v509 = vadd.f32 %v507, %v508
    %v510 = vrot.slane %v509, 2
    %v511 = vadd.f32 %v509, %v510
    %v512 = vrot.slane %v511, 1
    %v513 = vadd.f32 %v511, %v512
    %s514 = vtos %v513
    %v515 = vstv %s514
    %v516 = vadd.f32 %v515, %v249
    %v517 = vsel %vm209, %v500, %v516
    %s518 = scalar_lea.vmem %s0, 24
    %v519 = vld [vmem:[%s518] sm:$0x7f]
    %s520 = scalar_lea.vmem %s1, 24
    %v521 = vld [vmem:[%s520] sm:$0x7f]
    %v522 = vperm.slane %v519, 0
    %v523 = vmul.f32 %v54, %v522
    %v524 = vmul.f32 %v59, %v522
    %v525 = vperm.slane %v519, 1
    %v526 = vmul.f32 %v66, %v525
    %v527 = vmul.f32 %v70, %v525
    %v528 = vadd.f32 %v523, %v526
    %v529 = vadd.f32 %v524, %v527
    %v530 = vperm.slane %v519, 2
    %v531 = vmul.f32 %v79, %v530
    %v532 = vmul.f32 %v83, %v530
    %v533 = vadd.f32 %v528, %v531
    %v534 = vadd.f32 %v529, %v532
    %v535 = vperm.slane %v519, 3
    %v536 = vmul.f32 %v92, %v535
    %v537 = vmul.f32 %v96, %v535
    %v538 = vadd.f32 %v533, %v536
    %v539 = vadd.f32 %v534, %v537
    %v540 = vperm.slane %v519, 4
    %v541 = vmul.f32 %v105, %v540
    %v542 = vmul.f32 %v109, %v540
    %v543 = vadd.f32 %v538, %v541
    %v544 = vadd.f32 %v539, %v542
    %v545 = vperm.slane %v519, 5
    %v546 = vmul.f32 %v118, %v545
    %v547 = vmul.f32 %v122, %v545
    %v548 = vadd.f32 %v543, %v546
    %v549 = vadd.f32 %v544, %v547
    %v550 = vperm.slane %v519, 6
    %v551 = vmul.f32 %v131, %v550
    %v552 = vmul.f32 %v135, %v550
    %v553 = vadd.f32 %v548, %v551
    %v554 = vadd.f32 %v549, %v552
    %v555 = vadd.f32 %v553, %v145
    %v556 = vadd.f32 %v554, %v150
    %vm557 = vcmp.gt.f32.partialorder %v555, 1.0
    %vm558 = vcmp.gt.f32.partialorder %v556, 1.0
    %v559 = vsel %vm557, 1, 0
    %v560 = vsel %vm558, 1, 0
    %v561 = vcvt.s32.f32 %v559
    %v562 = vcvt.s32.f32 %v560
    %v563 = vperm.slane %v521, 0
    %v564 = vmul.f32 %v54, %v563
    %v565 = vmul.f32 %v59, %v563
    %v566 = vperm.slane %v521, 1
    %v567 = vmul.f32 %v66, %v566
    %v568 = vmul.f32 %v70, %v566
    %v569 = vadd.f32 %v564, %v567
    %v570 = vadd.f32 %v565, %v568
    %v571 = vperm.slane %v521, 2
    %v572 = vmul.f32 %v79, %v571
    %v573 = vmul.f32 %v83, %v571
    %v574 = vadd.f32 %v569, %v572
    %v575 = vadd.f32 %v570, %v573
    %v576 = vperm.slane %v521, 3
    %v577 = vmul.f32 %v92, %v576
    %v578 = vmul.f32 %v96, %v576
    %v579 = vadd.f32 %v574, %v577
    %v580 = vadd.f32 %v575, %v578
    %v581 = vperm.slane %v521, 4
    %v582 = vmul.f32 %v105, %v581
    %v583 = vmul.f32 %v109, %v581
    %v584 = vadd.f32 %v579, %v582
    %v585 = vadd.f32 %v580, %v583
    %v586 = vperm.slane %v521, 5
    %v587 = vmul.f32 %v118, %v586
    %v588 = vmul.f32 %v122, %v586
    %v589 = vadd.f32 %v584, %v587
    %v590 = vadd.f32 %v585, %v588
    %v591 = vperm.slane %v521, 6
    %v592 = vmul.f32 %v131, %v591
    %v593 = vmul.f32 %v135, %v591
    %v594 = vadd.f32 %v589, %v592
    %v595 = vadd.f32 %v590, %v593
    %v596 = vadd.f32 %v594, %v145
    %v597 = vadd.f32 %v595, %v150
    %vm598 = vcmp.gt.f32.partialorder %v596, 1.0
    %vm599 = vcmp.gt.f32.partialorder %v597, 1.0
    %v600 = vsel %vm598, 1, 0
    %v601 = vsel %vm599, 1, 0
    %v602 = vcvt.s32.f32 %v600
    %v603 = vcvt.s32.f32 %v601
    %606 = vrot.lane.b32.xlu0 %v602, 1
    %v607 = vpop.permute.xlu0 %606
    %608 = vrot.lane.b32.xlu0 %v603, 1
    %v609 = vpop.permute.xlu0 %608
    %v612 = vsel %vm209, 0.0, %v607
    %v613 = vsel %vm209, 0.0, %v609
    %v614 = vmax.f32 %v561, %v602
    %v615 = vmax.f32 %v562, %v603
    %v616 = vmax.f32 %v614, %v612
    %v617 = vmax.f32 %v615, %v613
    %v618 = vmul.f32 %v616, %v42
    %v619 = vmul.f32 %v617, %v43
    %v620 = vsel %vm218, %v618, 0.0
    %v621 = vsel %vm218, %v619, 0.0
    %v622 = vadd.f32 %v620, %v621
    %623 = vadd.xlane.f32.xlu0 %v622
    %v624 = vpop.xlane.xlu0 %623
    %v625 = vrot.slane %v624, 4
    %v626 = vadd.f32 %v624, %v625
    %v627 = vrot.slane %v626, 2
    %v628 = vadd.f32 %v626, %v627
    %v629 = vrot.slane %v628, 1
    %v630 = vadd.f32 %v628, %v629
    %s631 = vtos %v630
    %v632 = vstv %s631
    %v633 = vadd.f32 %v632, %v232
    %v634 = vmul.f32 %v616, %v45
    %v635 = vmul.f32 %v617, %v46
    %v636 = vsel %vm218, %v634, 0.0
    %v637 = vsel %vm218, %v635, 0.0
    %v638 = vadd.f32 %v636, %v637
    %639 = vadd.xlane.f32.xlu0 %v638
    %v640 = vpop.xlane.xlu0 %639
    %v641 = vrot.slane %v640, 4
    %v642 = vadd.f32 %v640, %v641
    %v643 = vrot.slane %v642, 2
    %v644 = vadd.f32 %v642, %v643
    %v645 = vrot.slane %v644, 1
    %v646 = vadd.f32 %v644, %v645
    %s647 = vtos %v646
    %v648 = vstv %s647
    %v649 = vadd.f32 %v648, %v249
    %v650 = vsel %vm209, %v633, %v649
    %s651 = scalar_lea.vmem %s0, 32
    %v652 = vld [vmem:[%s651] sm:$0x7f]
    %s653 = scalar_lea.vmem %s1, 32
    %v654 = vld [vmem:[%s653] sm:$0x7f]
    %v655 = vperm.slane %v652, 0
    %v656 = vmul.f32 %v54, %v655
    %v657 = vmul.f32 %v59, %v655
    %v658 = vperm.slane %v652, 1
    %v659 = vmul.f32 %v66, %v658
    %v660 = vmul.f32 %v70, %v658
    %v661 = vadd.f32 %v656, %v659
    %v662 = vadd.f32 %v657, %v660
    %v663 = vperm.slane %v652, 2
    %v664 = vmul.f32 %v79, %v663
    %v665 = vmul.f32 %v83, %v663
    %v666 = vadd.f32 %v661, %v664
    %v667 = vadd.f32 %v662, %v665
    %v668 = vperm.slane %v652, 3
    %v669 = vmul.f32 %v92, %v668
    %v670 = vmul.f32 %v96, %v668
    %v671 = vadd.f32 %v666, %v669
    %v672 = vadd.f32 %v667, %v670
    %v673 = vperm.slane %v652, 4
    %v674 = vmul.f32 %v105, %v673
    %v675 = vmul.f32 %v109, %v673
    %v676 = vadd.f32 %v671, %v674
    %v677 = vadd.f32 %v672, %v675
    %v678 = vperm.slane %v652, 5
    %v679 = vmul.f32 %v118, %v678
    %v680 = vmul.f32 %v122, %v678
    %v681 = vadd.f32 %v676, %v679
    %v682 = vadd.f32 %v677, %v680
    %v683 = vperm.slane %v652, 6
    %v684 = vmul.f32 %v131, %v683
    %v685 = vmul.f32 %v135, %v683
    %v686 = vadd.f32 %v681, %v684
    %v687 = vadd.f32 %v682, %v685
    %v688 = vadd.f32 %v686, %v145
    %v689 = vadd.f32 %v687, %v150
    %vm690 = vcmp.gt.f32.partialorder %v688, 1.0
    %vm691 = vcmp.gt.f32.partialorder %v689, 1.0
    %v692 = vsel %vm690, 1, 0
    %v693 = vsel %vm691, 1, 0
    %v694 = vcvt.s32.f32 %v692
    %v695 = vcvt.s32.f32 %v693
    %v696 = vperm.slane %v654, 0
    %v697 = vmul.f32 %v54, %v696
    %v698 = vmul.f32 %v59, %v696
    %v699 = vperm.slane %v654, 1
    %v700 = vmul.f32 %v66, %v699
    %v701 = vmul.f32 %v70, %v699
    %v702 = vadd.f32 %v697, %v700
    %v703 = vadd.f32 %v698, %v701
    %v704 = vperm.slane %v654, 2
    %v705 = vmul.f32 %v79, %v704
    %v706 = vmul.f32 %v83, %v704
    %v707 = vadd.f32 %v702, %v705
    %v708 = vadd.f32 %v703, %v706
    %v709 = vperm.slane %v654, 3
    %v710 = vmul.f32 %v92, %v709
    %v711 = vmul.f32 %v96, %v709
    %v712 = vadd.f32 %v707, %v710
    %v713 = vadd.f32 %v708, %v711
    %v714 = vperm.slane %v654, 4
    %v715 = vmul.f32 %v105, %v714
    %v716 = vmul.f32 %v109, %v714
    %v717 = vadd.f32 %v712, %v715
    %v718 = vadd.f32 %v713, %v716
    %v719 = vperm.slane %v654, 5
    %v720 = vmul.f32 %v118, %v719
    %v721 = vmul.f32 %v122, %v719
    %v722 = vadd.f32 %v717, %v720
    %v723 = vadd.f32 %v718, %v721
    %v724 = vperm.slane %v654, 6
    %v725 = vmul.f32 %v131, %v724
    %v726 = vmul.f32 %v135, %v724
    %v727 = vadd.f32 %v722, %v725
    %v728 = vadd.f32 %v723, %v726
    %v729 = vadd.f32 %v727, %v145
    %v730 = vadd.f32 %v728, %v150
    %vm731 = vcmp.gt.f32.partialorder %v729, 1.0
    %vm732 = vcmp.gt.f32.partialorder %v730, 1.0
    %v733 = vsel %vm731, 1, 0
    %v734 = vsel %vm732, 1, 0
    %v735 = vcvt.s32.f32 %v733
    %v736 = vcvt.s32.f32 %v734
    %739 = vrot.lane.b32.xlu0 %v735, 1
    %v740 = vpop.permute.xlu0 %739
    %741 = vrot.lane.b32.xlu0 %v736, 1
    %v742 = vpop.permute.xlu0 %741
    %v745 = vsel %vm209, 0.0, %v740
    %v746 = vsel %vm209, 0.0, %v742
    %v747 = vmax.f32 %v694, %v735
    %v748 = vmax.f32 %v695, %v736
    %v749 = vmax.f32 %v747, %v745
    %v750 = vmax.f32 %v748, %v746
    %v751 = vmul.f32 %v749, %v42
    %v752 = vmul.f32 %v750, %v43
    %v753 = vsel %vm218, %v751, 0.0
    %v754 = vsel %vm218, %v752, 0.0
    %v755 = vadd.f32 %v753, %v754
    %756 = vadd.xlane.f32.xlu0 %v755
    %v757 = vpop.xlane.xlu0 %756
    %v758 = vrot.slane %v757, 4
    %v759 = vadd.f32 %v757, %v758
    %v760 = vrot.slane %v759, 2
    %v761 = vadd.f32 %v759, %v760
    %v762 = vrot.slane %v761, 1
    %v763 = vadd.f32 %v761, %v762
    %s764 = vtos %v763
    %v765 = vstv %s764
    %v766 = vadd.f32 %v765, %v232
    %v767 = vmul.f32 %v749, %v45
    %v768 = vmul.f32 %v750, %v46
    %v769 = vsel %vm218, %v767, 0.0
    %v770 = vsel %vm218, %v768, 0.0
    %v771 = vadd.f32 %v769, %v770
    %772 = vadd.xlane.f32.xlu0 %v771
    %v773 = vpop.xlane.xlu0 %772
    %v774 = vrot.slane %v773, 4
    %v775 = vadd.f32 %v773, %v774
    %v776 = vrot.slane %v775, 2
    %v777 = vadd.f32 %v775, %v776
    %v778 = vrot.slane %v777, 1
    %v779 = vadd.f32 %v777, %v778
    %s780 = vtos %v779
    %v781 = vstv %s780
    %v782 = vadd.f32 %v781, %v249
    %v783 = vsel %vm209, %v766, %v782
    %s784 = scalar_lea.vmem %s0, 40
    %v785 = vld [vmem:[%s784] sm:$0x7f]
    %s786 = scalar_lea.vmem %s1, 40
    %v787 = vld [vmem:[%s786] sm:$0x7f]
    %v788 = vperm.slane %v785, 0
    %v789 = vmul.f32 %v54, %v788
    %v790 = vmul.f32 %v59, %v788
    %v791 = vperm.slane %v785, 1
    %v792 = vmul.f32 %v66, %v791
    %v793 = vmul.f32 %v70, %v791
    %v794 = vadd.f32 %v789, %v792
    %v795 = vadd.f32 %v790, %v793
    %v796 = vperm.slane %v785, 2
    %v797 = vmul.f32 %v79, %v796
    %v798 = vmul.f32 %v83, %v796
    %v799 = vadd.f32 %v794, %v797
    %v800 = vadd.f32 %v795, %v798
    %v801 = vperm.slane %v785, 3
    %v802 = vmul.f32 %v92, %v801
    %v803 = vmul.f32 %v96, %v801
    %v804 = vadd.f32 %v799, %v802
    %v805 = vadd.f32 %v800, %v803
    %v806 = vperm.slane %v785, 4
    %v807 = vmul.f32 %v105, %v806
    %v808 = vmul.f32 %v109, %v806
    %v809 = vadd.f32 %v804, %v807
    %v810 = vadd.f32 %v805, %v808
    %v811 = vperm.slane %v785, 5
    %v812 = vmul.f32 %v118, %v811
    %v813 = vmul.f32 %v122, %v811
    %v814 = vadd.f32 %v809, %v812
    %v815 = vadd.f32 %v810, %v813
    %v816 = vperm.slane %v785, 6
    %v817 = vmul.f32 %v131, %v816
    %v818 = vmul.f32 %v135, %v816
    %v819 = vadd.f32 %v814, %v817
    %v820 = vadd.f32 %v815, %v818
    %v821 = vadd.f32 %v819, %v145
    %v822 = vadd.f32 %v820, %v150
    %vm823 = vcmp.gt.f32.partialorder %v821, 1.0
    %vm824 = vcmp.gt.f32.partialorder %v822, 1.0
    %v825 = vsel %vm823, 1, 0
    %v826 = vsel %vm824, 1, 0
    %v827 = vcvt.s32.f32 %v825
    %v828 = vcvt.s32.f32 %v826
    %v829 = vperm.slane %v787, 0
    %v830 = vmul.f32 %v54, %v829
    %v831 = vmul.f32 %v59, %v829
    %v832 = vperm.slane %v787, 1
    %v833 = vmul.f32 %v66, %v832
    %v834 = vmul.f32 %v70, %v832
    %v835 = vadd.f32 %v830, %v833
    %v836 = vadd.f32 %v831, %v834
    %v837 = vperm.slane %v787, 2
    %v838 = vmul.f32 %v79, %v837
    %v839 = vmul.f32 %v83, %v837
    %v840 = vadd.f32 %v835, %v838
    %v841 = vadd.f32 %v836, %v839
    %v842 = vperm.slane %v787, 3
    %v843 = vmul.f32 %v92, %v842
    %v844 = vmul.f32 %v96, %v842
    %v845 = vadd.f32 %v840, %v843
    %v846 = vadd.f32 %v841, %v844
    %v847 = vperm.slane %v787, 4
    %v848 = vmul.f32 %v105, %v847
    %v849 = vmul.f32 %v109, %v847
    %v850 = vadd.f32 %v845, %v848
    %v851 = vadd.f32 %v846, %v849
    %v852 = vperm.slane %v787, 5
    %v853 = vmul.f32 %v118, %v852
    %v854 = vmul.f32 %v122, %v852
    %v855 = vadd.f32 %v850, %v853
    %v856 = vadd.f32 %v851, %v854
    %v857 = vperm.slane %v787, 6
    %v858 = vmul.f32 %v131, %v857
    %v859 = vmul.f32 %v135, %v857
    %v860 = vadd.f32 %v855, %v858
    %v861 = vadd.f32 %v856, %v859
    %v862 = vadd.f32 %v860, %v145
    %v863 = vadd.f32 %v861, %v150
    %vm864 = vcmp.gt.f32.partialorder %v862, 1.0
    %vm865 = vcmp.gt.f32.partialorder %v863, 1.0
    %v866 = vsel %vm864, 1, 0
    %v867 = vsel %vm865, 1, 0
    %v868 = vcvt.s32.f32 %v866
    %v869 = vcvt.s32.f32 %v867
    %872 = vrot.lane.b32.xlu0 %v868, 1
    %v873 = vpop.permute.xlu0 %872
    %874 = vrot.lane.b32.xlu0 %v869, 1
    %v875 = vpop.permute.xlu0 %874
    %v878 = vsel %vm209, 0.0, %v873
    %v879 = vsel %vm209, 0.0, %v875
    %v880 = vmax.f32 %v827, %v868
    %v881 = vmax.f32 %v828, %v869
    %v882 = vmax.f32 %v880, %v878
    %v883 = vmax.f32 %v881, %v879
    %v884 = vmul.f32 %v882, %v42
    %v885 = vmul.f32 %v883, %v43
    %v886 = vsel %vm218, %v884, 0.0
    %v887 = vsel %vm218, %v885, 0.0
    %v888 = vadd.f32 %v886, %v887
    %889 = vadd.xlane.f32.xlu0 %v888
    %v890 = vpop.xlane.xlu0 %889
    %v891 = vrot.slane %v890, 4
    %v892 = vadd.f32 %v890, %v891
    %v893 = vrot.slane %v892, 2
    %v894 = vadd.f32 %v892, %v893
    %v895 = vrot.slane %v894, 1
    %v896 = vadd.f32 %v894, %v895
    %s897 = vtos %v896
    %v898 = vstv %s897
    %v899 = vadd.f32 %v898, %v232
    %v900 = vmul.f32 %v882, %v45
    %v901 = vmul.f32 %v883, %v46
    %v902 = vsel %vm218, %v900, 0.0
    %v903 = vsel %vm218, %v901, 0.0
    %v904 = vadd.f32 %v902, %v903
    %905 = vadd.xlane.f32.xlu0 %v904
    %v906 = vpop.xlane.xlu0 %905
    %v907 = vrot.slane %v906, 4
    %v908 = vadd.f32 %v906, %v907
    %v909 = vrot.slane %v908, 2
    %v910 = vadd.f32 %v908, %v909
    %v911 = vrot.slane %v910, 1
    %v912 = vadd.f32 %v910, %v911
    %s913 = vtos %v912
    %v914 = vstv %s913
    %v915 = vadd.f32 %v914, %v249
    %v916 = vsel %vm209, %v899, %v915
    %s917 = scalar_lea.vmem %s0, 48
    %v918 = vld [vmem:[%s917] sm:$0x7f]
    %s919 = scalar_lea.vmem %s1, 48
    %v920 = vld [vmem:[%s919] sm:$0x7f]
    %v921 = vperm.slane %v918, 0
    %v922 = vmul.f32 %v54, %v921
    %v923 = vmul.f32 %v59, %v921
    %v924 = vperm.slane %v918, 1
    %v925 = vmul.f32 %v66, %v924
    %v926 = vmul.f32 %v70, %v924
    %v927 = vadd.f32 %v922, %v925
    %v928 = vadd.f32 %v923, %v926
    %v929 = vperm.slane %v918, 2
    %v930 = vmul.f32 %v79, %v929
    %v931 = vmul.f32 %v83, %v929
    %v932 = vadd.f32 %v927, %v930
    %v933 = vadd.f32 %v928, %v931
    %v934 = vperm.slane %v918, 3
    %v935 = vmul.f32 %v92, %v934
    %v936 = vmul.f32 %v96, %v934
    %v937 = vadd.f32 %v932, %v935
    %v938 = vadd.f32 %v933, %v936
    %v939 = vperm.slane %v918, 4
    %v940 = vmul.f32 %v105, %v939
    %v941 = vmul.f32 %v109, %v939
    %v942 = vadd.f32 %v937, %v940
    %v943 = vadd.f32 %v938, %v941
    %v944 = vperm.slane %v918, 5
    %v945 = vmul.f32 %v118, %v944
    %v946 = vmul.f32 %v122, %v944
    %v947 = vadd.f32 %v942, %v945
    %v948 = vadd.f32 %v943, %v946
    %v949 = vperm.slane %v918, 6
    %v950 = vmul.f32 %v131, %v949
    %v951 = vmul.f32 %v135, %v949
    %v952 = vadd.f32 %v947, %v950
    %v953 = vadd.f32 %v948, %v951
    %v954 = vadd.f32 %v952, %v145
    %v955 = vadd.f32 %v953, %v150
    %vm956 = vcmp.gt.f32.partialorder %v954, 1.0
    %vm957 = vcmp.gt.f32.partialorder %v955, 1.0
    %v958 = vsel %vm956, 1, 0
    %v959 = vsel %vm957, 1, 0
    %v960 = vcvt.s32.f32 %v958
    %v961 = vcvt.s32.f32 %v959
    %v962 = vperm.slane %v920, 0
    %v963 = vmul.f32 %v54, %v962
    %v964 = vmul.f32 %v59, %v962
    %v965 = vperm.slane %v920, 1
    %v966 = vmul.f32 %v66, %v965
    %v967 = vmul.f32 %v70, %v965
    %v968 = vadd.f32 %v963, %v966
    %v969 = vadd.f32 %v964, %v967
    %v970 = vperm.slane %v920, 2
    %v971 = vmul.f32 %v79, %v970
    %v972 = vmul.f32 %v83, %v970
    %v973 = vadd.f32 %v968, %v971
    %v974 = vadd.f32 %v969, %v972
    %v975 = vperm.slane %v920, 3
    %v976 = vmul.f32 %v92, %v975
    %v977 = vmul.f32 %v96, %v975
    %v978 = vadd.f32 %v973, %v976
    %v979 = vadd.f32 %v974, %v977
    %v980 = vperm.slane %v920, 4
    %v981 = vmul.f32 %v105, %v980
    %v982 = vmul.f32 %v109, %v980
    %v983 = vadd.f32 %v978, %v981
    %v984 = vadd.f32 %v979, %v982
    %v985 = vperm.slane %v920, 5
    %v986 = vmul.f32 %v118, %v985
    %v987 = vmul.f32 %v122, %v985
    %v988 = vadd.f32 %v983, %v986
    %v989 = vadd.f32 %v984, %v987
    %v990 = vperm.slane %v920, 6
    %v991 = vmul.f32 %v131, %v990
    %v992 = vmul.f32 %v135, %v990
    %v993 = vadd.f32 %v988, %v991
    %v994 = vadd.f32 %v989, %v992
    %v995 = vadd.f32 %v993, %v145
    %v996 = vadd.f32 %v994, %v150
    %vm997 = vcmp.gt.f32.partialorder %v995, 1.0
    %vm998 = vcmp.gt.f32.partialorder %v996, 1.0
    %v999 = vsel %vm997, 1, 0
    %v1000 = vsel %vm998, 1, 0
    %v1001 = vcvt.s32.f32 %v999
    %v1002 = vcvt.s32.f32 %v1000
    %1005 = vrot.lane.b32.xlu0 %v1001, 1
    %v1006 = vpop.permute.xlu0 %1005
    %1007 = vrot.lane.b32.xlu0 %v1002, 1
    %v1008 = vpop.permute.xlu0 %1007
    %v1011 = vsel %vm209, 0.0, %v1006
    %v1012 = vsel %vm209, 0.0, %v1008
    %v1013 = vmax.f32 %v960, %v1001
    %v1014 = vmax.f32 %v961, %v1002
    %v1015 = vmax.f32 %v1013, %v1011
    %v1016 = vmax.f32 %v1014, %v1012
    %v1017 = vmul.f32 %v1015, %v42
    %v1018 = vmul.f32 %v1016, %v43
    %v1019 = vsel %vm218, %v1017, 0.0
    %v1020 = vsel %vm218, %v1018, 0.0
    %v1021 = vadd.f32 %v1019, %v1020
    %1022 = vadd.xlane.f32.xlu0 %v1021
    %v1023 = vpop.xlane.xlu0 %1022
    %v1024 = vrot.slane %v1023, 4
    %v1025 = vadd.f32 %v1023, %v1024
    %v1026 = vrot.slane %v1025, 2
    %v1027 = vadd.f32 %v1025, %v1026
    %v1028 = vrot.slane %v1027, 1
    %v1029 = vadd.f32 %v1027, %v1028
    %s1030 = vtos %v1029
    %v1031 = vstv %s1030
    %v1032 = vadd.f32 %v1031, %v232
    %v1033 = vmul.f32 %v1015, %v45
    %v1034 = vmul.f32 %v1016, %v46
    %v1035 = vsel %vm218, %v1033, 0.0
    %v1036 = vsel %vm218, %v1034, 0.0
    %v1037 = vadd.f32 %v1035, %v1036
    %1038 = vadd.xlane.f32.xlu0 %v1037
    %v1039 = vpop.xlane.xlu0 %1038
    %v1040 = vrot.slane %v1039, 4
    %v1041 = vadd.f32 %v1039, %v1040
    %v1042 = vrot.slane %v1041, 2
    %v1043 = vadd.f32 %v1041, %v1042
    %v1044 = vrot.slane %v1043, 1
    %v1045 = vadd.f32 %v1043, %v1044
    %s1046 = vtos %v1045
    %v1047 = vstv %s1046
    %v1048 = vadd.f32 %v1047, %v249
    %v1049 = vsel %vm209, %v1032, %v1048
    %s1050 = scalar_lea.vmem %s0, 56
    %v1051 = vld [vmem:[%s1050] sm:$0x7f]
    %s1052 = scalar_lea.vmem %s1, 56
    %v1053 = vld [vmem:[%s1052] sm:$0x7f]
    %v1054 = vperm.slane %v1051, 0
    %v1055 = vmul.f32 %v54, %v1054
    %v1056 = vmul.f32 %v59, %v1054
    %v1057 = vperm.slane %v1051, 1
    %v1058 = vmul.f32 %v66, %v1057
    %v1059 = vmul.f32 %v70, %v1057
    %v1060 = vadd.f32 %v1055, %v1058
    %v1061 = vadd.f32 %v1056, %v1059
    %v1062 = vperm.slane %v1051, 2
    %v1063 = vmul.f32 %v79, %v1062
    %v1064 = vmul.f32 %v83, %v1062
    %v1065 = vadd.f32 %v1060, %v1063
    %v1066 = vadd.f32 %v1061, %v1064
    %v1067 = vperm.slane %v1051, 3
    %v1068 = vmul.f32 %v92, %v1067
    %v1069 = vmul.f32 %v96, %v1067
    %v1070 = vadd.f32 %v1065, %v1068
    %v1071 = vadd.f32 %v1066, %v1069
    %v1072 = vperm.slane %v1051, 4
    %v1073 = vmul.f32 %v105, %v1072
    %v1074 = vmul.f32 %v109, %v1072
    %v1075 = vadd.f32 %v1070, %v1073
    %v1076 = vadd.f32 %v1071, %v1074
    %v1077 = vperm.slane %v1051, 5
    %v1078 = vmul.f32 %v118, %v1077
    %v1079 = vmul.f32 %v122, %v1077
    %v1080 = vadd.f32 %v1075, %v1078
    %v1081 = vadd.f32 %v1076, %v1079
    %v1082 = vperm.slane %v1051, 6
    %v1083 = vmul.f32 %v131, %v1082
    %v1084 = vmul.f32 %v135, %v1082
    %v1085 = vadd.f32 %v1080, %v1083
    %v1086 = vadd.f32 %v1081, %v1084
    %v1087 = vadd.f32 %v1085, %v145
    %v1088 = vadd.f32 %v1086, %v150
    %vm1089 = vcmp.gt.f32.partialorder %v1087, 1.0
    %vm1090 = vcmp.gt.f32.partialorder %v1088, 1.0
    %v1091 = vsel %vm1089, 1, 0
    %v1092 = vsel %vm1090, 1, 0
    %v1093 = vcvt.s32.f32 %v1091
    %v1094 = vcvt.s32.f32 %v1092
    %v1095 = vperm.slane %v1053, 0
    %v1096 = vmul.f32 %v54, %v1095
    %v1097 = vmul.f32 %v59, %v1095
    %v1098 = vperm.slane %v1053, 1
    %v1099 = vmul.f32 %v66, %v1098
    %v1100 = vmul.f32 %v70, %v1098
    %v1101 = vadd.f32 %v1096, %v1099
    %v1102 = vadd.f32 %v1097, %v1100
    %v1103 = vperm.slane %v1053, 2
    %v1104 = vmul.f32 %v79, %v1103
    %v1105 = vmul.f32 %v83, %v1103
    %v1106 = vadd.f32 %v1101, %v1104
    %v1107 = vadd.f32 %v1102, %v1105
    %v1108 = vperm.slane %v1053, 3
    %v1109 = vmul.f32 %v92, %v1108
    %v1110 = vmul.f32 %v96, %v1108
    %v1111 = vadd.f32 %v1106, %v1109
    %v1112 = vadd.f32 %v1107, %v1110
    %v1113 = vperm.slane %v1053, 4
    %v1114 = vmul.f32 %v105, %v1113
    %v1115 = vmul.f32 %v109, %v1113
    %v1116 = vadd.f32 %v1111, %v1114
    %v1117 = vadd.f32 %v1112, %v1115
    %v1118 = vperm.slane %v1053, 5
    %v1119 = vmul.f32 %v118, %v1118
    %v1120 = vmul.f32 %v122, %v1118
    %v1121 = vadd.f32 %v1116, %v1119
    %v1122 = vadd.f32 %v1117, %v1120
    %v1123 = vperm.slane %v1053, 6
    %v1124 = vmul.f32 %v131, %v1123
    %v1125 = vmul.f32 %v135, %v1123
    %v1126 = vadd.f32 %v1121, %v1124
    %v1127 = vadd.f32 %v1122, %v1125
    %v1128 = vadd.f32 %v1126, %v145
    %v1129 = vadd.f32 %v1127, %v150
    %vm1130 = vcmp.gt.f32.partialorder %v1128, 1.0
    %vm1131 = vcmp.gt.f32.partialorder %v1129, 1.0
    %v1132 = vsel %vm1130, 1, 0
    %v1133 = vsel %vm1131, 1, 0
    %v1134 = vcvt.s32.f32 %v1132
    %v1135 = vcvt.s32.f32 %v1133
    %1138 = vrot.lane.b32.xlu0 %v1134, 1
    %v1139 = vpop.permute.xlu0 %1138
    %1140 = vrot.lane.b32.xlu0 %v1135, 1
    %v1141 = vpop.permute.xlu0 %1140
    %v1144 = vsel %vm209, 0.0, %v1139
    %v1145 = vsel %vm209, 0.0, %v1141
    %v1146 = vmax.f32 %v1093, %v1134
    %v1147 = vmax.f32 %v1094, %v1135
    %v1148 = vmax.f32 %v1146, %v1144
    %v1149 = vmax.f32 %v1147, %v1145
    %v1150 = vmul.f32 %v1148, %v42
    %v1151 = vmul.f32 %v1149, %v43
    %v1152 = vsel %vm218, %v1150, 0.0
    %v1153 = vsel %vm218, %v1151, 0.0
    %v1154 = vadd.f32 %v1152, %v1153
    %1155 = vadd.xlane.f32.xlu0 %v1154
    %v1156 = vpop.xlane.xlu0 %1155
    %v1157 = vrot.slane %v1156, 4
    %v1158 = vadd.f32 %v1156, %v1157
    %v1159 = vrot.slane %v1158, 2
    %v1160 = vadd.f32 %v1158, %v1159
    %v1161 = vrot.slane %v1160, 1
    %v1162 = vadd.f32 %v1160, %v1161
    %s1163 = vtos %v1162
    %v1164 = vstv %s1163
    %v1165 = vadd.f32 %v1164, %v232
    %v1166 = vmul.f32 %v1148, %v45
    %v1167 = vmul.f32 %v1149, %v46
    %v1168 = vsel %vm218, %v1166, 0.0
    %v1169 = vsel %vm218, %v1167, 0.0
    %v1170 = vadd.f32 %v1168, %v1169
    %1171 = vadd.xlane.f32.xlu0 %v1170
    %v1172 = vpop.xlane.xlu0 %1171
    %v1173 = vrot.slane %v1172, 4
    %v1174 = vadd.f32 %v1172, %v1173
    %v1175 = vrot.slane %v1174, 2
    %v1176 = vadd.f32 %v1174, %v1175
    %v1177 = vrot.slane %v1176, 1
    %v1178 = vadd.f32 %v1176, %v1177
    %s1179 = vtos %v1178
    %v1180 = vstv %s1179
    %v1181 = vadd.f32 %v1180, %v249
    %v1182 = vsel %vm209, %v1165, %v1181
    %v1184 = vrot.slane %v384, 7
    %v1187 = vrot.slane %v517, 6
    %v1190 = vrot.slane %v650, 5
    %v1193 = vrot.slane %v783, 4
    %v1196 = vrot.slane %v916, 3
    %v1199 = vrot.slane %v1049, 2
    %v1202 = vrot.slane %v1182, 1
    %vm1204 = vcmask 1040384
    %v1205 = vsel %vm1204, %v251, %v1184
    %vm1206 = vcmask 1041408
    %v1207 = vsel %vm1206, %v1205, %v1187
    %vm1208 = vcmask 1042432
    %v1209 = vsel %vm1208, %v1207, %v1190
    %vm1210 = vcmask 1043456
    %v1211 = vsel %vm1210, %v1209, %v1193
    %vm1212 = vcmask 1044480
    %v1213 = vsel %vm1212, %v1211, %v1196
    %vm1214 = vcmask 1045504
    %v1215 = vsel %vm1214, %v1213, %v1199
    %vm1216 = vcmask 1046528
    %v1217 = vsel %vm1216, %v1215, %v1202
    %vm1218 = vcmask 15360
    %1219 = vst.msk [vmem:[%s7] sm:$0xff] %vm1218, %v1217
    %vm1220 = vcmp.gt.f32.partialorder %v1217, 1.0
    %v1221 = vsel %vm1220, 1, 0
    %v1222 = vcvt.s32.f32 %v1221
    %1223 = vst.msk [vmem:[%s6] sm:$0xff] %vm1218, %v1222
    // Predicated region
    $region30: #{spiking_densenet_forward.1} parent=1 // pred_check
      _
    $region31: #{spiking_densenet_forward.1} parent=1 // pred_check_branch
      %1225 = sbr.rel (0) target = $region33
    $region32: #{spiking_densenet_forward.1} parent=1 // pred_region
      _
    $region33: #{spiking_densenet_forward.1} parent=1 // pred_fallthru
      _
    // Predicated region
    $region34: #{spiking_densenet_forward.1} parent=1 // pred_check
      _
    $region35: #{spiking_densenet_forward.1} parent=1 // pred_check_branch
      %1227 = sbr.rel (0) target = $region37
    $region36: #{spiking_densenet_forward.1} parent=1 // pred_region
      _
    $region37: #{spiking_densenet_forward.1} parent=1 // pred_fallthru
      _
    // Predicated region
    $region38: #{spiking_densenet_forward.1} parent=1 // pred_check
      _
    $region39: #{spiking_densenet_forward.1} parent=1 // pred_check_branch
      %1229 = sbr.rel (0) target = $region41
    $region40: #{spiking_densenet_forward.1} parent=1 // pred_region
      _
    $region41: #{spiking_densenet_forward.1} parent=1 // pred_fallthru
      _
    // Predicated region
    $region42: #{spiking_densenet_forward.1} parent=1 // pred_check
      _
    $region43: #{spiking_densenet_forward.1} parent=1 // pred_check_branch
      %1231 = sbr.rel (0) target = $region45
    $region44: #{spiking_densenet_forward.1} parent=1 // pred_region
      _
    $region45: #{spiking_densenet_forward.1} parent=1 // pred_fallthru
      _
    %1232 = vsyncpa [#allocation3], 1

</llo_original>
